<compile_context>
chip_gen: v5e
topology: v5e:2x2
jax: 0.10.0
libtpu: 0.0.40
codegen_flags: <defaults>
</compile_context>

<pallas_src>
import functools

import jax
import jax.numpy as jnp
import numpy as np
from jax.experimental import pallas as pl
from jax.experimental.pallas import tpu as pltpu


# ----------------------------------------------------------------------------
# Fused per-pixel reduction kernel
# ----------------------------------------------------------------------------
# Row layout of the lane-dense (NUM_ROWS, N) partial-sum output.  Rows
# [0, NUM_ACC) are accumulated over the batch inside the kernel; the remaining
# rows are written once per pixel tile on the last batch step.  Final scalars
# are obtained with a single jnp.sum(..., axis=-1) in JAX.
K_MSE, K_COS, K_MSUM = 0, 1, 2          # main keys: m*mse, m*(1-cos), m
KS_MSE, KS_COS, KS_MSUM = 3, 4, 5       # sim keys
HUB, HUB_M = 6, 7                       # main huber num, oob (also mag-uv denom)
HUBS, HUBS_M = 8, 9                     # sim huber num, oob_sim
MAGUV = 10                              # oob*(dfy^2+dfx^2)
NUM_ACC = 11
L1K, L1K_M = 11, 12                     # keys L1 num, (1-sal)
SAL_L1, SAL_L0 = 13, 14                 # |sal|, pseudo-L0(sal)
COM_Y, COM_X, COM_W = 15, 16, 17        # center-of-mass rows
NUM_ROWS = 18


def _fused_pixel_kernel(atlas_ref, arow_ref, keys_ref, keys_sim_ref, brow_ref,
                        out_ref, na2_ref, oobmax_ref, *, delta, inv_c):
    b = pl.program_id(1)
    nb = pl.num_programs(1)
    f32 = jnp.float32

    a = atlas_ref[...].astype(f32)            # (C, TP) atlas keys (VMEM resident over b)
    sal = arow_ref[0:1, :].astype(f32)        # (1, TP) atlas saliency
    oob = brow_ref[2:3, :].astype(f32)        # (1, TP) oob mask
    oob_sim = brow_ref[3:4, :].astype(f32)    # (1, TP) oob mask (sim)

    @pl.when(b == 0)
    def _per_tile_init():
        out_ref[...] = jnp.zeros_like(out_ref)
        # batch-invariant channel reduction hoisted out of the batch loop
        na2_ref[...] = jnp.sum(a * a, axis=0, keepdims=True)
        oobmax_ref[...] = oob

    @pl.when(b > 0)
    def _oobmax_update():
        oobmax_ref[...] = jnp.maximum(oobmax_ref[...], oob)

    na2 = na2_ref[...]

    def keys_rows(x, mask):
        diff = a - x
        mse = mask * (jnp.sum(diff * diff, axis=0, keepdims=True) * inv_c)   # (1, TP)
        dot = jnp.sum(a * x, axis=0, keepdims=True)
        nx2 = jnp.sum(x * x, axis=0, keepdims=True)
        cos = dot * jax.lax.rsqrt(jnp.maximum(na2 * nx2, 1e-16))
        return mse, mask * (1.0 - cos), mask

    def huber_rows(gt, m):
        d = sal - gt
        ad = jnp.abs(d)
        h = jnp.where(ad <= delta, 0.5 * d * d, delta * (ad - 0.5 * delta))
        return m * h, m

    mse0, cos0, msk0 = keys_rows(keys_ref[...].astype(f32), sal * oob)          # main
    mse1, cos1, msk1 = keys_rows(keys_sim_ref[...].astype(f32), sal * oob_sim)  # sim
    hub0, hm0 = huber_rows(brow_ref[0:1, :].astype(f32), oob)
    hub1, hm1 = huber_rows(brow_ref[1:2, :].astype(f32), oob_sim)
    dfy = brow_ref[4:5, :].astype(f32)
    dfx = brow_ref[5:6, :].astype(f32)
    maguv = oob * (dfy * dfy + dfx * dfx)

    # Lane-dense VPU accumulation into the resident output block; no per-step
    # cross-lane reductions and no SMEM scalar read-modify-writes.
    step_rows = (mse0, cos0, msk0, mse1, cos1, msk1, hub0, hm0, hub1, hm1, maguv)
    for i, r in enumerate(step_rows):
        out_ref[i:i + 1, :] += r

    @pl.when(b == nb - 1)
    def _per_tile_finalize():
        mask_l1 = 1.0 - sal
        abs_a = jnp.sum(jnp.abs(a), axis=0, keepdims=True)      # once per tile
        w = oobmax_ref[...] * sal
        yg = arow_ref[1:2, :].astype(f32)
        xg = arow_ref[2:3, :].astype(f32)
        out_ref[L1K:L1K + 1, :] = mask_l1 * abs_a
        out_ref[L1K_M:L1K_M + 1, :] = mask_l1
        out_ref[SAL_L1:SAL_L1 + 1, :] = jnp.abs(sal)
        out_ref[SAL_L0:SAL_L0 + 1, :] = (jax.nn.sigmoid(sal * 5.0) - 0.5) * 2.0
        out_ref[COM_Y:COM_Y + 1, :] = w * yg
        out_ref[COM_X:COM_X + 1, :] = w * xg
        out_ref[COM_W:COM_W + 1, :] = w


def _pick_pixel_tile(n, c, *, vmem_budget_bytes=20 * 1024 * 1024, cap=8192):
    """Largest pixel tile (multiple of 128 dividing n) fitting the VMEM budget."""
    assert n % 128 == 0, "H*W must be a multiple of 128 for lane-dense tiling"
    # f32 bytes per pixel lane, everything double-buffered by the BlockSpec
    # pipeline: 3 key-sized (C, TP) blocks, 3 atlas rows, 6 per-image rows,
    # NUM_ROWS output rows, plus 2 scratch rows padded to 8 sublanes.
    per_lane_bytes = 4 * (2 * 3 * c + 2 * (3 + 6 + NUM_ROWS) + 2 * 8)
    max_tp = min(cap, max(128, vmem_budget_bytes // per_lane_bytes))
    tp = 128
    t = 128
    while t <= min(n, max_tp):
        if n % t == 0:
            tp = t
        t += 128
    return tp


def fused_pixel_sums(atlas_k, arows, keys_main, keys_sim, brows, *, delta):
    """atlas_k: (C,N); arows: (3,N)=[sal, y, x]; keys_*: (B,C,N);
    brows: (B,6,N)=[sal_gt, sal_sim, oob, oob_sim, dfy, dfx].
    Returns (NUM_ROWS,) f32 sums indexed by the slot constants above."""
    C, N = atlas_k.shape
    B = keys_main.shape[0]
    TP = _pick_pixel_tile(N, C)
    NT = N // TP

    rows = pl.pallas_call(
        functools.partial(_fused_pixel_kernel, delta=float(delta), inv_c=1.0 / C),
        out_shape=jax.ShapeDtypeStruct((NUM_ROWS, N), jnp.float32),
        grid=(NT, B),                                       # batch innermost
        in_specs=[
            pl.BlockSpec((C, TP), lambda n, b: (0, n)),           # atlas keys (resident over b)
            pl.BlockSpec((3, TP), lambda n, b: (0, n)),           # atlas rows (sal, y, x)
            pl.BlockSpec((None, C, TP), lambda n, b: (b, 0, n)),  # congealed keys (main)
            pl.BlockSpec((None, C, TP), lambda n, b: (b, 0, n)),  # congealed keys (sim)
            pl.BlockSpec((None, 6, TP), lambda n, b: (b, 0, n)),  # per-image rows (coalesced)
        ],
        out_specs=pl.BlockSpec((NUM_ROWS, TP), lambda n, b: (0, n)),
        scratch_shapes=[pltpu.VMEM((1, TP), jnp.float32),         # hoisted sum_c a*a
                        pltpu.VMEM((1, TP), jnp.float32)],        # max over batch of oob
        compiler_params=pltpu.CompilerParams(
            dimension_semantics=("parallel", "arbitrary"),        # tiles across TCs (v7x)
            vmem_limit_bytes=32 * 1024 * 1024),
    )(atlas_k, arows, keys_main, keys_sim, brows)
    # All cross-lane reductions happen exactly once, here.
    return jnp.sum(rows, axis=-1)


# ----------------------------------------------------------------------------
# Fused local + global rigidity (Jacobian) kernel — lane-dense, roll-based
# ----------------------------------------------------------------------------
def _rigidity_kernel(vrow_ref, g_ref, oob_ref, out_ref, *,
                     rig_local, rig_global, grid_h, n_pix, img_w):
    f32 = jnp.float32
    gy = g_ref[0:1, :].astype(f32)                 # (1, N) grid component 0
    gx = g_ref[1:2, :].astype(f32)                 # (1, N) grid component 1
    oob = oob_ref[...].astype(f32)                 # (1, N)
    mask_loc = vrow_ref[0:1, :].astype(f32) * oob  # sal * valid(rig_local) * oob
    mask_glob = vrow_ref[1:2, :].astype(f32) * oob # valid(rig_global) * oob

    def jac_rows(rig_h, mask):
        sc = (grid_h / 2.0) / rig_h
        sh_h = n_pix - rig_h * img_w               # forward shift by rig_h rows
        sh_w = n_pix - rig_h                       # forward shift by rig_h cols
        # Full-tile lane rolls; wrapped border pixels are zeroed by `mask`.
        j1y = (pltpu.roll(gy, shift=sh_h, axis=1) - gy) * sc
        j1x = (pltpu.roll(gx, shift=sh_h, axis=1) - gx) * sc
        j2y = (pltpu.roll(gy, shift=sh_w, axis=1) - gy) * sc
        j2x = (pltpu.roll(gx, shift=sh_w, axis=1) - gx) * sc
        jtj00 = j2y * j2y + j2x * j2x
        jtj01 = j2y * j1y + j2x * j1x
        jtj11 = j1y * j1y + j1x * j1x
        a = jtj00 + 0.001
        d = jtj11 + 0.001
        det = a * d - jtj01 * jtj01                # > 0 by Cauchy-Schwarz
        t1 = jnp.sqrt(jtj00 * jtj00 + 2.0 * jtj01 * jtj01 + jtj11 * jtj11)
        t2 = jnp.sqrt(a * a + 2.0 * jtj01 * jtj01 + d * d) / det   # exact divide
        return (t1 + t2) * mask, mask

    ln, ld = jac_rows(rig_local, mask_loc)
    gn, gd = jac_rows(rig_global, mask_glob)
    out_ref[0:1, :] = ln
    out_ref[1:2, :] = ld
    out_ref[2:3, :] = gn
    out_ref[3:4, :] = gd


def fused_rigidity_sums(gyx, vrows, oob_rows, *, rig_local, rig_global, img_h, img_w):
    """gyx: (B,2,N) flattened grid comps; vrows: (2,N)=[sal*valid_loc, valid_glob];
    oob_rows: (B,1,N). Returns [loc_num, loc_den, glob_num, glob_den]."""
    B = gyx.shape[0]
    N = img_h * img_w
    assert N % 128 == 0
    out = pl.pallas_call(
        functools.partial(_rigidity_kernel, rig_local=int(rig_local),
                          rig_global=int(rig_global), grid_h=float(img_h),
                          n_pix=int(N), img_w=int(img_w)),
        out_shape=jax.ShapeDtypeStruct((B, 4, N), jnp.float32),
        grid=(B,),
        in_specs=[
            pl.BlockSpec((2, N), lambda b: (0, 0)),            # atlas-side masks (resident)
            pl.BlockSpec((None, 2, N), lambda b: (b, 0, 0)),   # grid comps for image b
            pl.BlockSpec((None, 1, N), lambda b: (b, 0, 0)),   # oob mask for image b
        ],
        out_specs=pl.BlockSpec((None, 4, N), lambda b: (b, 0, 0)),
        compiler_params=pltpu.CompilerParams(
            dimension_semantics=("parallel",)),                # per-image partials (dual-TC)
    )(vrows, gyx, oob_rows)
    return jnp.sum(out, axis=(0, 2))


# ----------------------------------------------------------------------------
# AtlasLoss.forward (glue + fused pallas kernels)
# ----------------------------------------------------------------------------
def atlas_loss_forward(outputs, inputs, config, yx_grid,
                       sim_only_bootstrap=False, mapping_losses_only=False):
    del inputs  # only used for gradual atlas training (disabled here)
    # TODO(synk): ext_gradual_atlas_training per-image detach path not implemented.
    losses = {}
    total = jnp.float32(0.0)
    f32 = jnp.float32

    atlas_keys = outputs['atlas_keys']                    # (C,H,W)
    atlas_sal = outputs['atlas_saliency']                 # (H,W)
    keys_gt = outputs['output_congealed_keys']            # (B,C,H,W)
    sal_gt = outputs['output_congealed_saliency']         # (B,1,H,W)
    oob = outputs['congealed_white_mask']                 # (B,1,H,W)
    sim = outputs['congealed_sim_keys_sal']
    C, H, W = atlas_keys.shape
    B = keys_gt.shape[0]
    N = H * W
    _, affine_params, delta_flow, final_grid = outputs['transformation_params']

    # glue: channel-major flattening (reshape only, no transposes).  The big
    # keys tensors keep their native dtype (upcast on load inside the kernel);
    # the small per-pixel scalars become lane-dense rows coalesced per side.
    atlas_k = atlas_keys.reshape(C, N)
    keys_main = keys_gt.reshape(B, C, N)
    keys_sim = sim['congealed_keys_sim'].reshape(B, C, N)
    sal = atlas_sal.reshape(1, N).astype(f32)
    arows = jnp.concatenate(
        [sal,
         yx_grid[0].reshape(1, N).astype(f32),
         yx_grid[1].reshape(1, N).astype(f32)], axis=0)                       # (3, N)
    brows = jnp.concatenate(
        [sal_gt.reshape(B, 1, N),
         sim['congealed_saliency_sim'].reshape(B, 1, N),
         oob.reshape(B, 1, N),
         sim['congealed_white_mask_sim'].reshape(B, 1, N),
         delta_flow[..., 0].reshape(B, 1, N),
         delta_flow[..., 1].reshape(B, 1, N)], axis=1)                        # (B, 6, N)

    s = fused_pixel_sums(atlas_k, arows, keys_main, keys_sim, brows,
                         delta=config['huber_delta_sal_loss'])

    cK = config['keys_output_loss_coeff']
    cC = config['keys_output_cosine_loss_coeff']

    keys_mse_loss = cK * s[K_MSE] / s[K_MSUM]
    keys_cosine_loss = cC * s[K_COS] / s[K_MSUM]
    losses['keys_mse_loss'] = keys_mse_loss
    losses['keys_cosine_loss'] = keys_cosine_loss
    total = total + keys_mse_loss + keys_cosine_loss

    if config['atlas_saliency_loss_coeff'] > 0:
        saliency_loss = config['atlas_saliency_loss_coeff'] * s[HUB] / s[HUB_M]
        losses['saliency_loss'] = saliency_loss
        total = total + saliency_loss

    if not mapping_losses_only:
        if config['sparsity_loss_saliency_coeff'] > 0:
            l1 = config['sparsity_l1_loss_saliency_coeff'] * s[SAL_L1] / N
            l0 = config['sparsity_l0_loss_saliency_coeff'] * s[SAL_L0] / N
            sp = config['sparsity_loss_saliency_coeff'] * (l1 + l0)
            losses['sparsity_l1_loss_atlas_saliency'] = l1
            losses['sparsity_l0_loss_atlas_saliency'] = l0
            losses['sparsity_loss_atlas_saliency'] = sp
            total = total + sp
        if config['sparsity_loss_keys_coeff'] > 0:
            spk = config['sparsity_loss_keys_coeff'] * s[L1K] / s[L1K_M]
            losses['sparsity_l1_loss_atlas_keys'] = spk
            total = total + spk
        if config['atlas_saliency_center_loss_coeff'] > 0:
            comy = s[COM_Y] / s[COM_W]
            comx = s[COM_X] / s[COM_W]
            cl = config['atlas_saliency_center_loss_coeff'] * (comy ** 2 + comx ** 2) / 2.0
            losses['atlas_saliency_center_loss'] = cl
            total = total + cl

    losses['transformation_params'] = affine_params
    if config['affine_scale_loss_coeff'] > 0:
        scale = affine_params[:, 1]
        scale_loss = jnp.mean(jnp.abs(1.0 - scale) ** 2)   # tiny (B scalars): plain JAX
        curr = config['affine_scale_loss_coeff'] * scale_loss
        losses['affine_scale_loss'] = curr
        total = total + curr

    if not sim_only_bootstrap:
        if config['mag_uv_loss_coeff'] > 0:
            mg = config['mag_uv_loss_coeff'] * s[MAGUV] / s[HUB_M]
            losses['mag_uv_loss'] = mg
            total = total + mg

        if (config['local_rigidity_loss_coeff'] > 0
                or config['global_rigidity_loss_coeff'] > 0):
            rig_loc = 1
            rig_glob = int(config['global_rig_derivative'])
            ii = jnp.arange(H)[:, None]
            jj = jnp.arange(W)[None, :]

            def valid(r):
                return ((ii < H - r) & (jj < W - r)).astype(f32).reshape(1, N)

            vrows = jnp.concatenate([sal * valid(rig_loc), valid(rig_glob)], axis=0)
            gyx = jnp.concatenate([final_grid[..., 0].reshape(B, 1, N),
                                   final_grid[..., 1].reshape(B, 1, N)],
                                  axis=1).astype(f32)
            rs = fused_rigidity_sums(gyx, vrows, oob.reshape(B, 1, N).astype(f32),
                                     rig_local=rig_loc, rig_global=rig_glob,
                                     img_h=H, img_w=W)
            if config['local_rigidity_loss_coeff'] > 0:
                lr = config['local_rigidity_loss_coeff'] * rs[0] / rs[1]
                losses['local_rigidity_loss'] = lr
                total = total + lr
            if config['global_rigidity_loss_coeff'] > 0:
                gr = config['global_rigidity_loss_coeff'] * rs[2] / rs[3]
                losses['global_rigidity_loss'] = gr
                total = total + gr

        # STN-sim losses (atlas detached in torch -> identical forward values)
        keys_mse_sim = cK * s[KS_MSE] / s[KS_MSUM]
        keys_cos_sim = cC * s[KS_COS] / s[KS_MSUM]
        losses['keys_mse_loss_sim'] = keys_mse_sim
        losses['keys_cosine_loss_sim'] = keys_cos_sim
        total = total + keys_mse_sim + keys_cos_sim
        if config['atlas_saliency_loss_coeff'] > 0:
            sl = config['atlas_saliency_loss_coeff'] * s[HUBS] / s[HUBS_M]
            losses['saliency_loss_sim'] = sl
            total = total + sl

    losses['total_loss'] = total
    return total, losses


# ----------------------------------------------------------------------------
# Pure-JAX reference (mirrors the torch semantics, NCHW) for validation
# ----------------------------------------------------------------------------
def _huber_none(pred, gt, delta):
    d = pred - gt
    ad = jnp.abs(d)
    return jnp.where(ad <= delta, 0.5 * d * d, delta * (ad - 0.5 * delta))


def _feat_mse(a, x):
    return jnp.mean((a - x) ** 2, axis=1)


def _cosine_distance(a, x):
    num = jnp.sum(a * x, axis=1)
    den = jnp.maximum(jnp.sqrt(jnp.sum(a * a, axis=1)) * jnp.sqrt(jnp.sum(x * x, axis=1)), 1e-8)
    return 1.0 - num / den


def _masked(vals, coeff, mask):
    return coeff * jnp.sum(mask * vals) / jnp.sum(mask)


def _rigidity_ref(final_grid, mask, rig_h):
    B, H = final_grid.shape[0], final_grid.shape[1]
    j1 = (final_grid[:, rig_h:, :, :] - final_grid[:, :-rig_h, :, :])[:, :, :-rig_h] * H / 2
    j2 = (final_grid[:, :, rig_h:, :] - final_grid[:, :, :-rig_h, :])[:, :-rig_h] * H / 2
    jac = jnp.stack((j2.reshape(B, -1, 2), j1.reshape(B, -1, 2)), axis=-1) / rig_h
    JtJ = jnp.einsum('bnij,bnjk->bnik', jnp.swapaxes(jac, 2, 3), jac)
    a = JtJ[:, :, 0, 0] + 0.001
    b = JtJ[:, :, 0, 1]
    c = JtJ[:, :, 1, 0]
    d = JtJ[:, :, 1, 1] + 0.001
    inv = jnp.stack([jnp.stack([d, -b], -1), jnp.stack([-c, a], -1)], -2)
    inv = inv / (a * d - b * c)[..., None, None]
    jl = jnp.sqrt((JtJ ** 2).sum((2, 3))) + jnp.sqrt((inv ** 2).sum((2, 3)))
    m = mask[:, :-rig_h, :-rig_h].reshape(B, -1)
    return jnp.sum(jl * m) / jnp.sum(m)


def ref_forward(outputs, config, yx_grid):
    keys_pred = outputs['atlas_keys'][None]
    sal_pred = outputs['atlas_saliency'][None, None]
    keys_gt = outputs['output_congealed_keys']
    sal_gt = outputs['output_congealed_saliency']
    oob = outputs['congealed_white_mask']
    delta = config['huber_delta_sal_loss']
    cK, cC = config['keys_output_loss_coeff'], config['keys_output_cosine_loss_coeff']
    total = jnp.float32(0.0)

    sal_oob = (sal_pred * oob)[:, 0]
    total += _masked(_feat_mse(keys_pred, keys_gt), cK, sal_oob)
    total += _masked(_cosine_distance(keys_pred, keys_gt), cC, sal_oob)
    total += _masked(_huber_none(sal_pred, sal_gt, delta),
                     config['atlas_saliency_loss_coeff'], oob)
    l1 = config['sparsity_l1_loss_saliency_coeff'] * jnp.mean(jnp.abs(sal_pred))
    l0 = config['sparsity_l0_loss_saliency_coeff'] * jnp.mean(
        (jax.nn.sigmoid(sal_pred * 5.0) - 0.5) * 2.0)
    total += config['sparsity_loss_saliency_coeff'] * (l1 + l0)
    mask_l1 = (1.0 - sal_pred)[:, 0]
    total += config['sparsity_loss_keys_coeff'] * jnp.sum(
        jnp.sum(jnp.abs(keys_pred), axis=1) * mask_l1) / jnp.sum(mask_l1)
    oob_max = jnp.max(oob, axis=0)
    wm = oob_max * sal_pred[:, 0]
    com = jnp.sum(wm * yx_grid, axis=(-1, -2)) / jnp.sum(wm)
    total += config['atlas_saliency_center_loss_coeff'] * jnp.mean(com ** 2)

    _, affine_params, delta_flow, final_grid = outputs['transformation_params']
    total += config['affine_scale_loss_coeff'] * jnp.mean(jnp.abs(1.0 - affine_params[:, 1]) ** 2)
    m = jnp.transpose(oob, (0, 2, 3, 1))
    total += config['mag_uv_loss_coeff'] * jnp.sum((delta_flow ** 2) * m) / jnp.sum(m)
    total += config['local_rigidity_loss_coeff'] * _rigidity_ref(final_grid, sal_oob, 1)
    total += config['global_rigidity_loss_coeff'] * _rigidity_ref(
        final_grid, oob[:, 0], config['global_rig_derivative'])

    sim = outputs['congealed_sim_keys_sal']
    oob_sim = sim['congealed_white_mask_sim']
    m_sim = (sal_pred * oob_sim)[:, 0]
    total += _masked(_feat_mse(keys_pred, sim['congealed_keys_sim']), cK, m_sim)
    total += _masked(_cosine_distance(keys_pred, sim['congealed_keys_sim']), cC, m_sim)
    total += _masked(_huber_none(sal_pred, sim['congealed_saliency_sim'], delta),
                     config['atlas_saliency_loss_coeff'], oob_sim)
    return total


# ----------------------------------------------------------------------------
if __name__ == "__main__":
    B, C, H, W = 2, 32, 16, 16          # batch, dino_embedding_size, atlas H/W

    config = dict(
        huber_delta_sal_loss=1.0,
        keys_output_loss_coeff=1.0,
        keys_output_cosine_loss_coeff=0.5,
        atlas_saliency_loss_coeff=1.0,
        ext_gradual_atlas_training=False,
        sparsity_loss_saliency_coeff=0.5,
        sparsity_l1_loss_saliency_coeff=1.0,
        sparsity_l0_loss_saliency_coeff=1.0,
        sparsity_loss_keys_coeff=0.1,
        atlas_saliency_center_loss_coeff=1.0,
        affine_scale_loss_coeff=1.0,
        mag_uv_loss_coeff=1.0,
        local_rigidity_loss_coeff=1.0,
        global_rigidity_loss_coeff=1.0,
        global_rig_derivative=2,
    )

    key = jax.random.PRNGKey(0)
    k = jax.random.split(key, 12)

    # identity sampling grid + noise (final_grid, (B,H,W,2) like torch grid_sample)
    ys = jnp.linspace(-1.0, 1.0, H)
    xs = jnp.linspace(-1.0, 1.0, W)
    gy0, gx0 = jnp.meshgrid(ys, xs, indexing='ij')
    base_grid = jnp.stack([gx0, gy0], axis=-1)                      # (H,W,2)
    final_grid = base_grid[None] + 0.05 * jax.random.normal(k[8], (B, H, W, 2), jnp.float32)

    affine_params = jnp.stack(
        [jax.random.normal(k[5], (B,), jnp.float32),
         1.0 + 0.1 * jax.random.normal(k[6], (B,), jnp.float32)], axis=1)   # (B,2), col 1 = scale
    delta_flow = 0.1 * jax.random.normal(k[7], (B, H, W, 2), jnp.float32)

    outputs = {
        'atlas_keys': jax.random.normal(k[0], (C, H, W), jnp.float32),
        'atlas_saliency': jax.nn.sigmoid(jax.random.normal(k[1], (H, W), jnp.float32)),
        'output_congealed_keys': jax.random.normal(k[2], (B, C, H, W), jnp.float32),
        'output_congealed_saliency': jax.nn.sigmoid(jax.random.normal(k[3], (B, 1, H, W), jnp.float32)),
        'congealed_white_mask': (jax.random.uniform(k[4], (B, 1, H, W)) > 0.2).astype(jnp.float32),
        'transformation_params': (None, affine_params, delta_flow, final_grid),
        'congealed_sim_keys_sal': {
            'congealed_keys_sim': jax.random.normal(k[9], (B, C, H, W), jnp.float32),
            'congealed_saliency_sim': jax.nn.sigmoid(jax.random.normal(k[10], (B, 1, H, W), jnp.float32)),
            'congealed_white_mask_sim': (jax.random.uniform(k[11], (B, 1, H, W)) > 0.2).astype(jnp.float32),
        },
    }
    inputs = {'current_im_idx': jnp.arange(B)}   # unused (ext_gradual_atlas_training=False)

    # yx_grid buffer from __init__ (deterministic; normalize -> [-1,1])
    # TODO(synk): exact `normalize` from the source repo unavailable; assume [-1,1] linspace.
    y_grid = 2.0 * jnp.arange(H, dtype=jnp.float32) / (H - 1) - 1.0
    x_grid = 2.0 * jnp.arange(W, dtype=jnp.float32) / (W - 1) - 1.0
    yy, xx = jnp.meshgrid(y_grid, x_grid, indexing='ij')
    yx_grid = jnp.stack([yy, xx], axis=0)                            # (2,H,W)

    total_loss, losses = atlas_loss_forward(outputs, inputs, config, yx_grid)
    total_loss = jax.block_until_ready(total_loss)

    ref_total = jax.block_until_ready(ref_forward(outputs, config, yx_grid))
    assert np.isfinite(float(total_loss))
    np.testing.assert_allclose(float(total_loss), float(ref_total), rtol=2e-3, atol=1e-5)

    print("KERNEL_OK")
</pallas_src>

<mosaic_0001>
module attributes {stable_mosaic.version = 11 : i64} {
  func.func @_fused_pixel_kernel(%arg0: i32, %arg1: i32, %arg2: memref<32x256xf32, #tpu.memory_space<vmem>>, %arg3: memref<3x256xf32, #tpu.memory_space<vmem>>, %arg4: memref<1x32x256xf32, #tpu.memory_space<vmem>>, %arg5: memref<1x32x256xf32, #tpu.memory_space<vmem>>, %arg6: memref<1x6x256xf32, #tpu.memory_space<vmem>>, %arg7: memref<18x256xf32, #tpu.memory_space<vmem>>, %arg8: memref<1x256xf32, #tpu.memory_space<vmem>>, %arg9: memref<1x256xf32, #tpu.memory_space<vmem>>) attributes {dimension_semantics = [#tpu.dimension_semantics<parallel>, #tpu.dimension_semantics<arbitrary>], iteration_bounds = array<i64: 1, 2>, scalar_prefetch = 0 : i64, scratch_operands = 2 : i64, tpu.core_type = #tpu.core_type<tc>, window_params = [{transform_indices = @transform_0, window_bounds = array<i64: 32, 256>}, {transform_indices = @transform_1, window_bounds = array<i64: 3, 256>}, {transform_indices = @transform_2, window_bounds = array<i64: 1, 32, 256>}, {transform_indices = @transform_3, window_bounds = array<i64: 1, 32, 256>}, {transform_indices = @transform_4, window_bounds = array<i64: 1, 6, 256>}, {transform_indices = @transform_5, window_bounds = array<i64: 18, 256>}]} {
    %c0 = arith.constant 0 : index
    %c0_0 = arith.constant 0 : index
    %0 = vector.load %arg2[%c0, %c0_0] : memref<32x256xf32, #tpu.memory_space<vmem>>, vector<32x256xf32>
    %c0_1 = arith.constant 0 : index
    %c0_2 = arith.constant 0 : index
    %1 = vector.load %arg3[%c0_1, %c0_2] : memref<3x256xf32, #tpu.memory_space<vmem>>, vector<1x256xf32>
    %c0_3 = arith.constant 0 : index
    %c2 = arith.constant 2 : index
    %c0_4 = arith.constant 0 : index
    %2 = vector.load %arg6[%c0_3, %c2, %c0_4] : memref<1x6x256xf32, #tpu.memory_space<vmem>>, vector<1x1x256xf32>
    %3 = vector.shape_cast %2 : vector<1x1x256xf32> to vector<1x256xf32>
    %c0_5 = arith.constant 0 : index
    %c3 = arith.constant 3 : index
    %c0_6 = arith.constant 0 : index
    %4 = vector.load %arg6[%c0_5, %c3, %c0_6] : memref<1x6x256xf32, #tpu.memory_space<vmem>>, vector<1x1x256xf32>
    %5 = vector.shape_cast %4 : vector<1x1x256xf32> to vector<1x256xf32>
    %c0_i32 = arith.constant 0 : i32
    %6 = arith.cmpi eq, %arg1, %c0_i32 : i32
    %7 = arith.extui %6 : i1 to i32
    %c0_i32_7 = arith.constant 0 : i32
    %8 = arith.cmpi ne, %7, %c0_i32_7 : i32
    scf.if %8 {
      %cst_86 = arith.constant 0.000000e+00 : f32
      %135 = vector.broadcast %cst_86 : f32 to vector<18x256xf32>
      %c0_87 = arith.constant 0 : index
      %c0_88 = arith.constant 0 : index
      %136 = vector.load %arg7[%c0_87, %c0_88] : memref<18x256xf32, #tpu.memory_space<vmem>>, vector<18x256xf32>
      tpu.vector_store %arg7[%c0_87, %c0_88], %135 {strides = array<i32>} : memref<18x256xf32, #tpu.memory_space<vmem>>, vector<18x256xf32>,
      %137 = arith.mulf %0, %0 : vector<32x256xf32>
      %cst_89 = arith.constant dense<0.000000e+00> : vector<256xf32>
      %138 = vector.multi_reduction <add>, %137, %cst_89 [0] : vector<32x256xf32> to vector<256xf32>
      %139 = vector.shape_cast %138 : vector<256xf32> to vector<1x256xf32>
      %c0_90 = arith.constant 0 : index
      %c0_91 = arith.constant 0 : index
      %140 = vector.load %arg8[%c0_90, %c0_91] : memref<1x256xf32, #tpu.memory_space<vmem>>, vector<1x256xf32>
      tpu.vector_store %arg8[%c0_90, %c0_91], %139 {strides = array<i32>} : memref<1x256xf32, #tpu.memory_space<vmem>>, vector<1x256xf32>,
      %c0_92 = arith.constant 0 : index
      %c0_93 = arith.constant 0 : index
      %141 = vector.load %arg9[%c0_92, %c0_93] : memref<1x256xf32, #tpu.memory_space<vmem>>, vector<1x256xf32>
      tpu.vector_store %arg9[%c0_92, %c0_93], %3 {strides = array<i32>} : memref<1x256xf32, #tpu.memory_space<vmem>>, vector<1x256xf32>,
    } else {
    }
    %c0_i32_8 = arith.constant 0 : i32
    %9 = arith.cmpi sgt, %arg1, %c0_i32_8 : i32
    %10 = arith.extui %9 : i1 to i32
    %c0_i32_9 = arith.constant 0 : i32
    %11 = arith.cmpi ne, %10, %c0_i32_9 : i32
    scf.if %11 {
      %c0_86 = arith.constant 0 : index
      %c0_87 = arith.constant 0 : index
      %135 = vector.load %arg9[%c0_86, %c0_87] : memref<1x256xf32, #tpu.memory_space<vmem>>, vector<1x256xf32>
      %136 = arith.maximumf %135, %3 : vector<1x256xf32>
      %c0_88 = arith.constant 0 : index
      %c0_89 = arith.constant 0 : index
      %137 = vector.load %arg9[%c0_88, %c0_89] : memref<1x256xf32, #tpu.memory_space<vmem>>, vector<1x256xf32>
      tpu.vector_store %arg9[%c0_88, %c0_89], %136 {strides = array<i32>} : memref<1x256xf32, #tpu.memory_space<vmem>>, vector<1x256xf32>,
    } else {
    }
    %c0_10 = arith.constant 0 : index
    %c0_11 = arith.constant 0 : index
    %12 = vector.load %arg8[%c0_10, %c0_11] : memref<1x256xf32, #tpu.memory_space<vmem>>, vector<1x256xf32>
    %c0_12 = arith.constant 0 : index
    %c0_13 = arith.constant 0 : index
    %c0_14 = arith.constant 0 : index
    %13 = vector.load %arg4[%c0_12, %c0_13, %c0_14] : memref<1x32x256xf32, #tpu.memory_space<vmem>>, vector<1x32x256xf32>
    %14 = vector.shape_cast %13 : vector<1x32x256xf32> to vector<32x256xf32>
    %15 = arith.mulf %1, %3 : vector<1x256xf32>
    %16 = arith.subf %0, %14 : vector<32x256xf32>
    %17 = arith.mulf %16, %16 : vector<32x256xf32>
    %cst = arith.constant dense<0.000000e+00> : vector<256xf32>
    %18 = vector.multi_reduction <add>, %17, %cst [0] : vector<32x256xf32> to vector<256xf32>
    %19 = vector.shape_cast %18 : vector<256xf32> to vector<1x256xf32>
    %cst_15 = arith.constant 3.125000e-02 : f32
    %20 = vector.broadcast %cst_15 : f32 to vector<1x256xf32>
    %21 = arith.mulf %19, %20 : vector<1x256xf32>
    %22 = arith.mulf %15, %21 : vector<1x256xf32>
    %23 = arith.mulf %0, %14 : vector<32x256xf32>
    %cst_16 = arith.constant dense<0.000000e+00> : vector<256xf32>
    %24 = vector.multi_reduction <add>, %23, %cst_16 [0] : vector<32x256xf32> to vector<256xf32>
    %25 = vector.shape_cast %24 : vector<256xf32> to vector<1x256xf32>
    %26 = arith.mulf %14, %14 : vector<32x256xf32>
    %cst_17 = arith.constant dense<0.000000e+00> : vector<256xf32>
    %27 = vector.multi_reduction <add>, %26, %cst_17 [0] : vector<32x256xf32> to vector<256xf32>
    %28 = vector.shape_cast %27 : vector<256xf32> to vector<1x256xf32>
    %29 = arith.mulf %12, %28 : vector<1x256xf32>
    %cst_18 = arith.constant 1.000000e-16 : f32
    %30 = vector.broadcast %cst_18 : f32 to vector<1x256xf32>
    %31 = arith.maximumf %29, %30 : vector<1x256xf32>
    %32 = math.rsqrt %31 : vector<1x256xf32>
    %33 = arith.mulf %25, %32 : vector<1x256xf32>
    %cst_19 = arith.constant 1.000000e+00 : f32
    %34 = vector.broadcast %cst_19 : f32 to vector<1x256xf32>
    %35 = arith.subf %34, %33 : vector<1x256xf32>
    %36 = arith.mulf %15, %35 : vector<1x256xf32>
    %c0_20 = arith.constant 0 : index
    %c0_21 = arith.constant 0 : index
    %c0_22 = arith.constant 0 : index
    %37 = vector.load %arg5[%c0_20, %c0_21, %c0_22] : memref<1x32x256xf32, #tpu.memory_space<vmem>>, vector<1x32x256xf32>
    %38 = vector.shape_cast %37 : vector<1x32x256xf32> to vector<32x256xf32>
    %39 = arith.mulf %1, %5 : vector<1x256xf32>
    %40 = arith.subf %0, %38 : vector<32x256xf32>
    %41 = arith.mulf %40, %40 : vector<32x256xf32>
    %cst_23 = arith.constant dense<0.000000e+00> : vector<256xf32>
    %42 = vector.multi_reduction <add>, %41, %cst_23 [0] : vector<32x256xf32> to vector<256xf32>
    %43 = vector.shape_cast %42 : vector<256xf32> to vector<1x256xf32>
    %cst_24 = arith.constant 3.125000e-02 : f32
    %44 = vector.broadcast %cst_24 : f32 to vector<1x256xf32>
    %45 = arith.mulf %43, %44 : vector<1x256xf32>
    %46 = arith.mulf %39, %45 : vector<1x256xf32>
    %47 = arith.mulf %0, %38 : vector<32x256xf32>
    %cst_25 = arith.constant dense<0.000000e+00> : vector<256xf32>
    %48 = vector.multi_reduction <add>, %47, %cst_25 [0] : vector<32x256xf32> to vector<256xf32>
    %49 = vector.shape_cast %48 : vector<256xf32> to vector<1x256xf32>
    %50 = arith.mulf %38, %38 : vector<32x256xf32>
    %cst_26 = arith.constant dense<0.000000e+00> : vector<256xf32>
    %51 = vector.multi_reduction <add>, %50, %cst_26 [0] : vector<32x256xf32> to vector<256xf32>
    %52 = vector.shape_cast %51 : vector<256xf32> to vector<1x256xf32>
    %53 = arith.mulf %12, %52 : vector<1x256xf32>
    %cst_27 = arith.constant 1.000000e-16 : f32
    %54 = vector.broadcast %cst_27 : f32 to vector<1x256xf32>
    %55 = arith.maximumf %53, %54 : vector<1x256xf32>
    %56 = math.rsqrt %55 : vector<1x256xf32>
    %57 = arith.mulf %49, %56 : vector<1x256xf32>
    %cst_28 = arith.constant 1.000000e+00 : f32
    %58 = vector.broadcast %cst_28 : f32 to vector<1x256xf32>
    %59 = arith.subf %58, %57 : vector<1x256xf32>
    %60 = arith.mulf %39, %59 : vector<1x256xf32>
    %c0_29 = arith.constant 0 : index
    %c0_30 = arith.constant 0 : index
    %c0_31 = arith.constant 0 : index
    %61 = vector.load %arg6[%c0_29, %c0_30, %c0_31] : memref<1x6x256xf32, #tpu.memory_space<vmem>>, vector<1x1x256xf32>
    %62 = vector.shape_cast %61 : vector<1x1x256xf32> to vector<1x256xf32>
    %63 = arith.subf %1, %62 : vector<1x256xf32>
    %64 = math.absf %63 : vector<1x256xf32>
    %cst_32 = arith.constant 1.000000e+00 : f32
    %65 = vector.broadcast %cst_32 : f32 to vector<1x256xf32>
    %66 = arith.cmpf ole, %64, %65 : vector<1x256xf32>
    %cst_33 = arith.constant 5.000000e-01 : f32
    %67 = vector.broadcast %cst_33 : f32 to vector<1x256xf32>
    %68 = arith.mulf %67, %63 : vector<1x256xf32>
    %69 = arith.mulf %68, %63 : vector<1x256xf32>
    %cst_34 = arith.constant 5.000000e-01 : f32
    %70 = vector.broadcast %cst_34 : f32 to vector<1x256xf32>
    %71 = arith.subf %64, %70 : vector<1x256xf32>
    %cst_35 = arith.constant 1.000000e+00 : f32
    %72 = vector.broadcast %cst_35 : f32 to vector<1x256xf32>
    %73 = arith.mulf %72, %71 : vector<1x256xf32>
    %74 = arith.select %66, %69, %73 : vector<1x256xi1>, vector<1x256xf32>
    %75 = arith.mulf %3, %74 : vector<1x256xf32>
    %c0_36 = arith.constant 0 : index
    %c1 = arith.constant 1 : index
    %c0_37 = arith.constant 0 : index
    %76 = vector.load %arg6[%c0_36, %c1, %c0_37] : memref<1x6x256xf32, #tpu.memory_space<vmem>>, vector<1x1x256xf32>
    %77 = vector.shape_cast %76 : vector<1x1x256xf32> to vector<1x256xf32>
    %78 = arith.subf %1, %77 : vector<1x256xf32>
    %79 = math.absf %78 : vector<1x256xf32>
    %cst_38 = arith.constant 1.000000e+00 : f32
    %80 = vector.broadcast %cst_38 : f32 to vector<1x256xf32>
    %81 = arith.cmpf ole, %79, %80 : vector<1x256xf32>
    %cst_39 = arith.constant 5.000000e-01 : f32
    %82 = vector.broadcast %cst_39 : f32 to vector<1x256xf32>
    %83 = arith.mulf %82, %78 : vector<1x256xf32>
    %84 = arith.mulf %83, %78 : vector<1x256xf32>
    %cst_40 = arith.constant 5.000000e-01 : f32
    %85 = vector.broadcast %cst_40 : f32 to vector<1x256xf32>
    %86 = arith.subf %79, %85 : vector<1x256xf32>
    %cst_41 = arith.constant 1.000000e+00 : f32
    %87 = vector.broadcast %cst_41 : f32 to vector<1x256xf32>
    %88 = arith.mulf %87, %86 : vector<1x256xf32>
    %89 = arith.select %81, %84, %88 : vector<1x256xi1>, vector<1x256xf32>
    %90 = arith.mulf %5, %89 : vector<1x256xf32>
    %c0_42 = arith.constant 0 : index
    %c4 = arith.constant 4 : index
    %c0_43 = arith.constant 0 : index
    %91 = vector.load %arg6[%c0_42, %c4, %c0_43] : memref<1x6x256xf32, #tpu.memory_space<vmem>>, vector<1x1x256xf32>
    %92 = vector.shape_cast %91 : vector<1x1x256xf32> to vector<1x256xf32>
    %c0_44 = arith.constant 0 : index
    %c5 = arith.constant 5 : index
    %c0_45 = arith.constant 0 : index
    %93 = vector.load %arg6[%c0_44, %c5, %c0_45] : memref<1x6x256xf32, #tpu.memory_space<vmem>>, vector<1x1x256xf32>
    %94 = vector.shape_cast %93 : vector<1x1x256xf32> to vector<1x256xf32>
    %95 = arith.mulf %92, %92 : vector<1x256xf32>
    %96 = arith.mulf %94, %94 : vector<1x256xf32>
    %97 = arith.addf %95, %96 : vector<1x256xf32>
    %98 = arith.mulf %3, %97 : vector<1x256xf32>
    %c0_46 = arith.constant 0 : index
    %c0_47 = arith.constant 0 : index
    %99 = vector.load %arg7[%c0_46, %c0_47] : memref<18x256xf32, #tpu.memory_space<vmem>>, vector<1x256xf32>
    %100 = arith.addf %99, %22 : vector<1x256xf32>
    %c0_48 = arith.constant 0 : index
    %c0_49 = arith.constant 0 : index
    %101 = vector.load %arg7[%c0_48, %c0_49] : memref<18x256xf32, #tpu.memory_space<vmem>>, vector<1x256xf32>
    tpu.vector_store %arg7[%c0_48, %c0_49], %100 {strides = array<i32>} : memref<18x256xf32, #tpu.memory_space<vmem>>, vector<1x256xf32>,
    %c1_50 = arith.constant 1 : index
    %c0_51 = arith.constant 0 : index
    %102 = vector.load %arg7[%c1_50, %c0_51] : memref<18x256xf32, #tpu.memory_space<vmem>>, vector<1x256xf32>
    %103 = arith.addf %102, %36 : vector<1x256xf32>
    %c1_52 = arith.constant 1 : index
    %c0_53 = arith.constant 0 : index
    %104 = vector.load %arg7[%c1_52, %c0_53] : memref<18x256xf32, #tpu.memory_space<vmem>>, vector<1x256xf32>
    tpu.vector_store %arg7[%c1_52, %c0_53], %103 {strides = array<i32>} : memref<18x256xf32, #tpu.memory_space<vmem>>, vector<1x256xf32>,
    %c2_54 = arith.constant 2 : index
    %c0_55 = arith.constant 0 : index
    %105 = vector.load %arg7[%c2_54, %c0_55] : memref<18x256xf32, #tpu.memory_space<vmem>>, vector<1x256xf32>
    %106 = arith.addf %105, %15 : vector<1x256xf32>
    %c2_56 = arith.constant 2 : index
    %c0_57 = arith.constant 0 : index
    %107 = vector.load %arg7[%c2_56, %c0_57] : memref<18x256xf32, #tpu.memory_space<vmem>>, vector<1x256xf32>
    tpu.vector_store %arg7[%c2_56, %c0_57], %106 {strides = array<i32>} : memref<18x256xf32, #tpu.memory_space<vmem>>, vector<1x256xf32>,
    %c3_58 = arith.constant 3 : index
    %c0_59 = arith.constant 0 : index
    %108 = vector.load %arg7[%c3_58, %c0_59] : memref<18x256xf32, #tpu.memory_space<vmem>>, vector<1x256xf32>
    %109 = arith.addf %108, %46 : vector<1x256xf32>
    %c3_60 = arith.constant 3 : index
    %c0_61 = arith.constant 0 : index
    %110 = vector.load %arg7[%c3_60, %c0_61] : memref<18x256xf32, #tpu.memory_space<vmem>>, vector<1x256xf32>
    tpu.vector_store %arg7[%c3_60, %c0_61], %109 {strides = array<i32>} : memref<18x256xf32, #tpu.memory_space<vmem>>, vector<1x256xf32>,
    %c4_62 = arith.constant 4 : index
    %c0_63 = arith.constant 0 : index
    %111 = vector.load %arg7[%c4_62, %c0_63] : memref<18x256xf32, #tpu.memory_space<vmem>>, vector<1x256xf32>
    %112 = arith.addf %111, %60 : vector<1x256xf32>
    %c4_64 = arith.constant 4 : index
    %c0_65 = arith.constant 0 : index
    %113 = vector.load %arg7[%c4_64, %c0_65] : memref<18x256xf32, #tpu.memory_space<vmem>>, vector<1x256xf32>
    tpu.vector_store %arg7[%c4_64, %c0_65], %112 {strides = array<i32>} : memref<18x256xf32, #tpu.memory_space<vmem>>, vector<1x256xf32>,
    %c5_66 = arith.constant 5 : index
    %c0_67 = arith.constant 0 : index
    %114 = vector.load %arg7[%c5_66, %c0_67] : memref<18x256xf32, #tpu.memory_space<vmem>>, vector<1x256xf32>
    %115 = arith.addf %114, %39 : vector<1x256xf32>
    %c5_68 = arith.constant 5 : index
    %c0_69 = arith.constant 0 : index
    %116 = vector.load %arg7[%c5_68, %c0_69] : memref<18x256xf32, #tpu.memory_space<vmem>>, vector<1x256xf32>
    tpu.vector_store %arg7[%c5_68, %c0_69], %115 {strides = array<i32>} : memref<18x256xf32, #tpu.memory_space<vmem>>, vector<1x256xf32>,
    %c6 = arith.constant 6 : index
    %c0_70 = arith.constant 0 : index
    %117 = vector.load %arg7[%c6, %c0_70] : memref<18x256xf32, #tpu.memory_space<vmem>>, vector<1x256xf32>
    %118 = arith.addf %117, %75 : vector<1x256xf32>
    %c6_71 = arith.constant 6 : index
    %c0_72 = arith.constant 0 : index
    %119 = vector.load %arg7[%c6_71, %c0_72] : memref<18x256xf32, #tpu.memory_space<vmem>>, vector<1x256xf32>
    tpu.vector_store %arg7[%c6_71, %c0_72], %118 {strides = array<i32>} : memref<18x256xf32, #tpu.memory_space<vmem>>, vector<1x256xf32>,
    %c7 = arith.constant 7 : index
    %c0_73 = arith.constant 0 : index
    %120 = vector.load %arg7[%c7, %c0_73] : memref<18x256xf32, #tpu.memory_space<vmem>>, vector<1x256xf32>
    %121 = arith.addf %120, %3 : vector<1x256xf32>
    %c7_74 = arith.constant 7 : index
    %c0_75 = arith.constant 0 : index
    %122 = vector.load %arg7[%c7_74, %c0_75] : memref<18x256xf32, #tpu.memory_space<vmem>>, vector<1x256xf32>
    tpu.vector_store %arg7[%c7_74, %c0_75], %121 {strides = array<i32>} : memref<18x256xf32, #tpu.memory_space<vmem>>, vector<1x256xf32>,
    %c8 = arith.constant 8 : index
    %c0_76 = arith.constant 0 : index
    %123 = vector.load %arg7[%c8, %c0_76] : memref<18x256xf32, #tpu.memory_space<vmem>>, vector<1x256xf32>
    %124 = arith.addf %123, %90 : vector<1x256xf32>
    %c8_77 = arith.constant 8 : index
    %c0_78 = arith.constant 0 : index
    %125 = vector.load %arg7[%c8_77, %c0_78] : memref<18x256xf32, #tpu.memory_space<vmem>>, vector<1x256xf32>
    tpu.vector_store %arg7[%c8_77, %c0_78], %124 {strides = array<i32>} : memref<18x256xf32, #tpu.memory_space<vmem>>, vector<1x256xf32>,
    %c9 = arith.constant 9 : index
    %c0_79 = arith.constant 0 : index
    %126 = vector.load %arg7[%c9, %c0_79] : memref<18x256xf32, #tpu.memory_space<vmem>>, vector<1x256xf32>
    %127 = arith.addf %126, %5 : vector<1x256xf32>
    %c9_80 = arith.constant 9 : index
    %c0_81 = arith.constant 0 : index
    %128 = vector.load %arg7[%c9_80, %c0_81] : memref<18x256xf32, #tpu.memory_space<vmem>>, vector<1x256xf32>
    tpu.vector_store %arg7[%c9_80, %c0_81], %127 {strides = array<i32>} : memref<18x256xf32, #tpu.memory_space<vmem>>, vector<1x256xf32>,
    %c10 = arith.constant 10 : index
    %c0_82 = arith.constant 0 : index
    %129 = vector.load %arg7[%c10, %c0_82] : memref<18x256xf32, #tpu.memory_space<vmem>>, vector<1x256xf32>
    %130 = arith.addf %129, %98 : vector<1x256xf32>
    %c10_83 = arith.constant 10 : index
    %c0_84 = arith.constant 0 : index
    %131 = vector.load %arg7[%c10_83, %c0_84] : memref<18x256xf32, #tpu.memory_space<vmem>>, vector<1x256xf32>
    tpu.vector_store %arg7[%c10_83, %c0_84], %130 {strides = array<i32>} : memref<18x256xf32, #tpu.memory_space<vmem>>, vector<1x256xf32>,
    %c1_i32 = arith.constant 1 : i32
    %132 = arith.cmpi eq, %arg1, %c1_i32 : i32
    %133 = arith.extui %132 : i1 to i32
    %c0_i32_85 = arith.constant 0 : i32
    %134 = arith.cmpi ne, %133, %c0_i32_85 : i32
    scf.if %134 {
      %cst_86 = arith.constant 1.000000e+00 : f32
      %135 = vector.broadcast %cst_86 : f32 to vector<1x256xf32>
      %136 = arith.subf %135, %1 : vector<1x256xf32>
      %137 = math.absf %0 : vector<32x256xf32>
      %cst_87 = arith.constant dense<0.000000e+00> : vector<256xf32>
      %138 = vector.multi_reduction <add>, %137, %cst_87 [0] : vector<32x256xf32> to vector<256xf32>
      %139 = vector.shape_cast %138 : vector<256xf32> to vector<1x256xf32>
      %c0_88 = arith.constant 0 : index
      %c0_89 = arith.constant 0 : index
      %140 = vector.load %arg9[%c0_88, %c0_89] : memref<1x256xf32, #tpu.memory_space<vmem>>, vector<1x256xf32>
      %141 = arith.mulf %140, %1 : vector<1x256xf32>
      %c1_90 = arith.constant 1 : index
      %c0_91 = arith.constant 0 : index
      %142 = vector.load %arg3[%c1_90, %c0_91] : memref<3x256xf32, #tpu.memory_space<vmem>>, vector<1x256xf32>
      %c2_92 = arith.constant 2 : index
      %c0_93 = arith.constant 0 : index
      %143 = vector.load %arg3[%c2_92, %c0_93] : memref<3x256xf32, #tpu.memory_space<vmem>>, vector<1x256xf32>
      %144 = arith.mulf %136, %139 : vector<1x256xf32>
      %c11 = arith.constant 11 : index
      %c0_94 = arith.constant 0 : index
      %145 = vector.load %arg7[%c11, %c0_94] : memref<18x256xf32, #tpu.memory_space<vmem>>, vector<1x256xf32>
      tpu.vector_store %arg7[%c11, %c0_94], %144 {strides = array<i32>} : memref<18x256xf32, #tpu.memory_space<vmem>>, vector<1x256xf32>,
      %c12 = arith.constant 12 : index
      %c0_95 = arith.constant 0 : index
      %146 = vector.load %arg7[%c12, %c0_95] : memref<18x256xf32, #tpu.memory_space<vmem>>, vector<1x256xf32>
      tpu.vector_store %arg7[%c12, %c0_95], %136 {strides = array<i32>} : memref<18x256xf32, #tpu.memory_space<vmem>>, vector<1x256xf32>,
      %147 = math.absf %1 : vector<1x256xf32>
      %c13 = arith.constant 13 : index
      %c0_96 = arith.constant 0 : index
      %148 = vector.load %arg7[%c13, %c0_96] : memref<18x256xf32, #tpu.memory_space<vmem>>, vector<1x256xf32>
      tpu.vector_store %arg7[%c13, %c0_96], %147 {strides = array<i32>} : memref<18x256xf32, #tpu.memory_space<vmem>>, vector<1x256xf32>,
      %cst_97 = arith.constant 5.000000e+00 : f32
      %149 = vector.broadcast %cst_97 : f32 to vector<1x256xf32>
      %150 = arith.mulf %1, %149 : vector<1x256xf32>
      %151 = arith.negf %150 : vector<1x256xf32>
      %152 = math.exp %151 : vector<1x256xf32>
      %cst_98 = arith.constant 1.000000e+00 : f32
      %153 = vector.broadcast %cst_98 : f32 to vector<1x256xf32>
      %154 = arith.addf %153, %152 : vector<1x256xf32>
      %155 = arith.divf %153, %154 : vector<1x256xf32>
      %cst_99 = arith.constant 5.000000e-01 : f32
      %156 = vector.broadcast %cst_99 : f32 to vector<1x256xf32>
      %157 = arith.subf %155, %156 : vector<1x256xf32>
      %cst_100 = arith.constant 2.000000e+00 : f32
      %158 = vector.broadcast %cst_100 : f32 to vector<1x256xf32>
      %159 = arith.mulf %157, %158 : vector<1x256xf32>
      %c14 = arith.constant 14 : index
      %c0_101 = arith.constant 0 : index
      %160 = vector.load %arg7[%c14, %c0_101] : memref<18x256xf32, #tpu.memory_space<vmem>>, vector<1x256xf32>
      tpu.vector_store %arg7[%c14, %c0_101], %159 {strides = array<i32>} : memref<18x256xf32, #tpu.memory_space<vmem>>, vector<1x256xf32>,
      %161 = arith.mulf %141, %142 : vector<1x256xf32>
      %c15 = arith.constant 15 : index
      %c0_102 = arith.constant 0 : index
      %162 = vector.load %arg7[%c15, %c0_102] : memref<18x256xf32, #tpu.memory_space<vmem>>, vector<1x256xf32>
      tpu.vector_store %arg7[%c15, %c0_102], %161 {strides = array<i32>} : memref<18x256xf32, #tpu.memory_space<vmem>>, vector<1x256xf32>,
      %163 = arith.mulf %141, %143 : vector<1x256xf32>
      %c16 = arith.constant 16 : index
      %c0_103 = arith.constant 0 : index
      %164 = vector.load %arg7[%c16, %c0_103] : memref<18x256xf32, #tpu.memory_space<vmem>>, vector<1x256xf32>
      tpu.vector_store %arg7[%c16, %c0_103], %163 {strides = array<i32>} : memref<18x256xf32, #tpu.memory_space<vmem>>, vector<1x256xf32>,
      %c17 = arith.constant 17 : index
      %c0_104 = arith.constant 0 : index
      %165 = vector.load %arg7[%c17, %c0_104] : memref<18x256xf32, #tpu.memory_space<vmem>>, vector<1x256xf32>
      tpu.vector_store %arg7[%c17, %c0_104], %141 {strides = array<i32>} : memref<18x256xf32, #tpu.memory_space<vmem>>, vector<1x256xf32>,
    } else {
    }
    return
  }
  func.func @transform_0(%arg0: i32, %arg1: i32) -> (i32, i32) {
    %c0_i32 = arith.constant 0 : i32
    %c0_i32_0 = arith.constant 0 : i32
    return %c0_i32, %arg0 : i32, i32
  }
  func.func @transform_1(%arg0: i32, %arg1: i32) -> (i32, i32) {
    %c0_i32 = arith.constant 0 : i32
    %c0_i32_0 = arith.constant 0 : i32
    return %c0_i32, %arg0 : i32, i32
  }
  func.func @transform_2(%arg0: i32, %arg1: i32) -> (i32, i32, i32) {
    %c0_i32 = arith.constant 0 : i32
    %c0_i32_0 = arith.constant 0 : i32
    return %arg1, %c0_i32, %arg0 : i32, i32, i32
  }
  func.func @transform_3(%arg0: i32, %arg1: i32) -> (i32, i32, i32) {
    %c0_i32 = arith.constant 0 : i32
    %c0_i32_0 = arith.constant 0 : i32
    return %arg1, %c0_i32, %arg0 : i32, i32, i32
  }
  func.func @transform_4(%arg0: i32, %arg1: i32) -> (i32, i32, i32) {
    %c0_i32 = arith.constant 0 : i32
    %c0_i32_0 = arith.constant 0 : i32
    return %arg1, %c0_i32, %arg0 : i32, i32, i32
  }
  func.func @transform_5(%arg0: i32, %arg1: i32) -> (i32, i32) {
    %c0_i32 = arith.constant 0 : i32
    %c0_i32_0 = arith.constant 0 : i32
    return %c0_i32, %arg0 : i32, i32
  }
}

</mosaic_0001>

<llo_original>
// kernel: tpu_custom_call.1
$region0: #{tpu_custom_call.1}
  #allocation0 [shape = 'u32[]', space=smem, size = 0x4, offset = 0x4, fixed_abs, tag = 'smem constant byte address 0x4 - core index']
  #allocation1 [shape = 'u32[72,128]{1,0:T(1,128)}', space=vmem, size = 0x9000, scoped, tag = 'internal scratch']
  #allocation2 [shape = 'f32[1,256]{1,0:T(1,128)}', space=vmem, size = 0x400, scoped, tag = 'scratch operand']
  #allocation3 [shape = 'f32[1,256]{1,0:T(1,128)}', space=vmem, size = 0x400, scoped, tag = 'scratch operand']
  %s0 = inlined_call_operand.hbm [shape: f32[32,256], index: 0, kind: input, shape index: {}]
  %s1 = inlined_call_operand.vmem [shape: f32[3,256], index: 1, kind: input, shape index: {}]
  %s2 = inlined_call_operand.hbm [shape: f32[2,32,256], index: 2, kind: input, shape index: {}]
  %s3 = inlined_call_operand.hbm [shape: f32[2,32,256], index: 3, kind: input, shape index: {}]
  %s4 = inlined_call_operand.vmem [shape: f32[2,6,256], index: 4, kind: input, shape index: {}]
  %s5 = inlined_call_operand.hbm [shape: f32[18,256], index: 5, kind: output, shape index: {}]
  %s6 = sld [smem:[#allocation0]]
  $region77: #{tpu_custom_call.1} parent=0
    _
  %s8 = ssub.s32 1, %s6
  %s9 = scalar_select 0, %s8, %s6
  $region1: #{tpu_custom_call.1} parent=0
    #allocation4 [shape = 'u8[32768]{0}', space=vmem, size = 0x8000, scoped, tag = 'input window, operand 0, single buffered']
    #allocation5 [shape = 's32[2]{0}', space=sflag, size = 0x8, scoped, tag = 'scoped memory for tpu_custom_call.1']
    #allocation6 [shape = 's32[2]{0}', space=sflag, size = 0x8, scoped, tag = 'scoped memory for tpu_custom_call.1']
    #allocation7 [shape = 'u8[65536]{0}', space=vmem, size = 0x10000, scoped, tag = 'input window, operand 2']
    #allocation8 [shape = 's32[2]{0}', space=sflag, size = 0x8, scoped, tag = 'scoped memory for tpu_custom_call.1']
    #allocation9 [shape = 'u8[65536]{0}', space=vmem, size = 0x10000, scoped, tag = 'input window, operand 3']
    #allocation10 [shape = 'u8[24576]{0}', space=vmem, size = 0x6000, scoped, tag = 'output window, operand 0, single buffered']
    %10 = vsyncpa [#allocation5], 0
    %11 = vsyncpa [#allocation8], 0
    %s12 = scalar_lea.sflag [#allocation8], 1
    %13 = vsyncpa %s12, 0
    %14 = vsyncpa [#allocation6], 0
    loop: start=0, step=1, limit=4
    $region2: #{tpu_custom_call.1} parent=1 // loop_pre_header
      _
    $region3: #{tpu_custom_call.1} parent=1 // loop_header
      %s16 = sphi 0, %s20
      %p17 = scmp.ge.s32.totalorder %s16, 4
      %s23 = sphi 0, %s35
      %s24 = sphi 0, %s31
      %s25 = sphi 0, %s23
      %s26 = sphi 0, %s24
      %s27 = sphi 0, %s25
      %s28 = sphi 0, %s26
      %s38 = sphi 0, %s40
      %s41 = sphi 0, %s38
      %s42 = sphi 0, %s41
      %s58 = sphi 0, %s42
      %s64 = sphi 0, %s66
      %s67 = sphi 0, %s64
      %s68 = sphi 0, %s67
      %s84 = sphi 0, %s68
      %s92 = sphi 0, %s94
      %s95 = sphi 0, %s92
      %s96 = sphi 0, %s95
      %s112 = sphi 0, %s96
      %s120 = sphi 0, %s122
      %s123 = sphi 0, %s120
      %s124 = sphi 0, %s123
      %s140 = sphi 0, %s124
      %s148 = sphi 0, %s150
      %s151 = sphi 0, %s148
      %s152 = sphi 0, %s151
      %s168 = sphi 0, %s152
      %s174 = sphi 0, %s176
      %s177 = sphi 0, %s174
      %s178 = sphi 0, %s177
      %s194 = sphi 0, %s178
    $region4: #{tpu_custom_call.1} parent=1 // loop_header_branch
      %19 = sbr.rel (%p17) target = $region8
    $region5: #{tpu_custom_call.1} parent=1 // loop_body
      %s21 = ssub.s32 %s16, 1
      %s22 = ssub.s32 %s16, 2
      %s29 = sadd.s32 1, %s24
      %p30 = scmp.ge.s32.totalorder %s29, 2
      %s31 = scalar_select %p30, 0, %s29
      %s32 = sadd.s32 1, %s23
      %s33 = scalar_select %p30, %s32, %s23
      %p34 = scmp.ge.s32.totalorder %s33, 1
      %s35 = scalar_select %p34, 0, %s33
      %s36 = ssub.s32 %s23, %s35
      %p37 = scmp.eq.s32.totalorder %s36, 0
      %s39 = sadd.s32 %s38, 1
      %s40 = scalar_select %p37, %s38, %s39
      %p43 = pneg %p37
      %p44 = scmp.eq.s32.totalorder %s16, 1
      %p45 = por %p43, %p44
      %p46 = scmp.ne.s32.totalorder %s38, %s41
      %p47 = scmp.eq.s32.totalorder %s16, 0
      %p48 = por %p46, %p47
      %p49 = scmp.ne.s32.totalorder %s38, %s41
      %p50 = scmp.eq.s32.totalorder %s21, 1
      %p51 = por %p49, %p50
      %p52 = scmp.ne.s32.totalorder %s41, %s42
      %p53 = scmp.eq.s32.totalorder %s21, 0
      %p54 = por %p52, %p53
      %p55 = scmp.ne.s32.totalorder %s41, %s42
      %p56 = scmp.eq.s32.totalorder %s22, 1
      %p57 = por %p55, %p56
      %p59 = scmp.ne.s32.totalorder %s42, %s58
      %p60 = scmp.eq.s32.totalorder %s22, 0
      %p61 = por %p59, %p60
      %s62 = ssub.s32 %s23, %s35
      %p63 = scmp.eq.s32.totalorder %s62, 0
      %s65 = sadd.s32 %s64, 1
      %s66 = scalar_select %p63, %s64, %s65
      %p69 = pneg %p63
      %p70 = scmp.eq.s32.totalorder %s16, 1
      %p71 = por %p69, %p70
      %p72 = scmp.ne.s32.totalorder %s64, %s67
      %p73 = scmp.eq.s32.totalorder %s16, 0
      %p74 = por %p72, %p73
      %p75 = scmp.ne.s32.totalorder %s64, %s67
      %p76 = scmp.eq.s32.totalorder %s21, 1
      %p77 = por %p75, %p76
      %p78 = scmp.ne.s32.totalorder %s67, %s68
      %p79 = scmp.eq.s32.totalorder %s21, 0
      %p80 = por %p78, %p79
      %p81 = scmp.ne.s32.totalorder %s67, %s68
      %p82 = scmp.eq.s32.totalorder %s22, 1
      %p83 = por %p81, %p82
      %p85 = scmp.ne.s32.totalorder %s68, %s84
      %p86 = scmp.eq.s32.totalorder %s22, 0
      %p87 = por %p85, %p86
      %s88 = ssub.s32 %s24, %s31
      %s89 = ssub.s32 %s23, %s35
      %s90 = sor.u32 %s88, %s89
      %p91 = scmp.eq.s32.totalorder %s90, 0
      %s93 = sadd.s32 %s92, 1
      %s94 = scalar_select %p91, %s92, %s93
      %p97 = pneg %p91
      %p98 = scmp.eq.s32.totalorder %s16, 1
      %p99 = por %p97, %p98
      %p100 = scmp.ne.s32.totalorder %s92, %s95
      %p101 = scmp.eq.s32.totalorder %s16, 0
      %p102 = por %p100, %p101
      %p103 = scmp.ne.s32.totalorder %s92, %s95
      %p104 = scmp.eq.s32.totalorder %s21, 1
      %p105 = por %p103, %p104
      %p106 = scmp.ne.s32.totalorder %s95, %s96
      %p107 = scmp.eq.s32.totalorder %s21, 0
      %p108 = por %p106, %p107
      %p109 = scmp.ne.s32.totalorder %s95, %s96
      %p110 = scmp.eq.s32.totalorder %s22, 1
      %p111 = por %p109, %p110
      %p113 = scmp.ne.s32.totalorder %s96, %s112
      %p114 = scmp.eq.s32.totalorder %s22, 0
      %p115 = por %p113, %p114
      %s116 = ssub.s32 %s24, %s31
      %s117 = ssub.s32 %s23, %s35
      %s118 = sor.u32 %s116, %s117
      %p119 = scmp.eq.s32.totalorder %s118, 0
      %s121 = sadd.s32 %s120, 1
      %s122 = scalar_select %p119, %s120, %s121
      %p125 = pneg %p119
      %p126 = scmp.eq.s32.totalorder %s16, 1
      %p127 = por %p125, %p126
      %p128 = scmp.ne.s32.totalorder %s120, %s123
      %p129 = scmp.eq.s32.totalorder %s16, 0
      %p130 = por %p128, %p129
      %p131 = scmp.ne.s32.totalorder %s120, %s123
      %p132 = scmp.eq.s32.totalorder %s21, 1
      %p133 = por %p131, %p132
      %p134 = scmp.ne.s32.totalorder %s123, %s124
      %p135 = scmp.eq.s32.totalorder %s21, 0
      %p136 = por %p134, %p135
      %p137 = scmp.ne.s32.totalorder %s123, %s124
      %p138 = scmp.eq.s32.totalorder %s22, 1
      %p139 = por %p137, %p138
      %p141 = scmp.ne.s32.totalorder %s124, %s140
      %p142 = scmp.eq.s32.totalorder %s22, 0
      %p143 = por %p141, %p142
      %s144 = ssub.s32 %s24, %s31
      %s145 = ssub.s32 %s23, %s35
      %s146 = sor.u32 %s144, %s145
      %p147 = scmp.eq.s32.totalorder %s146, 0
      %s149 = sadd.s32 %s148, 1
      %s150 = scalar_select %p147, %s148, %s149
      %p153 = pneg %p147
      %p154 = scmp.eq.s32.totalorder %s16, 1
      %p155 = por %p153, %p154
      %p156 = scmp.ne.s32.totalorder %s148, %s151
      %p157 = scmp.eq.s32.totalorder %s16, 0
      %p158 = por %p156, %p157
      %p159 = scmp.ne.s32.totalorder %s148, %s151
      %p160 = scmp.eq.s32.totalorder %s21, 1
      %p161 = por %p159, %p160
      %p162 = scmp.ne.s32.totalorder %s151, %s152
      %p163 = scmp.eq.s32.totalorder %s21, 0
      %p164 = por %p162, %p163
      %p165 = scmp.ne.s32.totalorder %s151, %s152
      %p166 = scmp.eq.s32.totalorder %s22, 1
      %p167 = por %p165, %p166
      %p169 = scmp.ne.s32.totalorder %s152, %s168
      %p170 = scmp.eq.s32.totalorder %s22, 0
      %p171 = por %p169, %p170
      %s172 = ssub.s32 %s23, %s35
      %p173 = scmp.eq.s32.totalorder %s172, 0
      %s175 = sadd.s32 %s174, 1
      %s176 = scalar_select %p173, %s174, %s175
      %p179 = pneg %p173
      %p180 = scmp.eq.s32.totalorder %s16, 1
      %p181 = por %p179, %p180
      %p182 = scmp.ne.s32.totalorder %s174, %s177
      %p183 = scmp.eq.s32.totalorder %s16, 0
      %p184 = por %p182, %p183
      %p185 = scmp.ne.s32.totalorder %s174, %s177
      %p186 = scmp.eq.s32.totalorder %s21, 1
      %p187 = por %p185, %p186
      %p188 = scmp.ne.s32.totalorder %s177, %s178
      %p189 = scmp.eq.s32.totalorder %s21, 0
      %p190 = por %p188, %p189
      %p191 = scmp.ne.s32.totalorder %s177, %s178
      %p192 = scmp.eq.s32.totalorder %s22, 1
      %p193 = por %p191, %p192
      %p195 = scmp.ne.s32.totalorder %s178, %s194
      %p196 = scmp.eq.s32.totalorder %s22, 0
      %p197 = por %p195, %p196
      %p198 = scmp.le.s32.totalorder 1, %s16
      %p199 = scmp.lt.s32.totalorder %s16, 3
      %p200 = pnand %p198, %p199
      %p201 = pneg %p200
      // Predicated region
      $region9: #{tpu_custom_call.1} parent=5 // pred_check
        _
      $region10: #{tpu_custom_call.1} parent=5 // pred_check_branch
        %203 = sbr.rel (%p200) target = $region12
      $region11: #{tpu_custom_call.1} parent=5 // pred_region
        %s204 = ssub.s32 %s16, 1
        // Predicated region
        $region13: #{tpu_custom_call.1} parent=11 // pred_check
          %p205 = pneg %p54
        $region14: #{tpu_custom_call.1} parent=11 // pred_check_branch
          %207 = sbr.rel (%p205) target = $region16
        $region15: #{tpu_custom_call.1} parent=11 // pred_region
          %s208 = smul.u32 2, %s25
          %210 = vsyncadd [#allocation5], 0
          %s211 = smul.addr %s208, 8
          %s212 = scalar_lea.hbm %s0, %s211
          %s213 = sshll.u32 %s212, 4
          %s214 = int_to_ptr.hbm [resolvable:$true] %s213
          %s215 = sshll.u32 [#allocation4], 4
          %s216 = int_to_ptr.vmem [resolvable:$true] %s215
          %221 = dma.hbm_to_vmem [thread:$0]  %s214, 1024, %s216, [#allocation5], 256, 256, 16
        $region16: #{tpu_custom_call.1} parent=11 // pred_fallthru
          _
        // Predicated region
        $region17: #{tpu_custom_call.1} parent=11 // pred_check
          %p222 = pneg %p80
        $region18: #{tpu_custom_call.1} parent=11 // pred_check_branch
          %224 = sbr.rel (%p222) target = $region20
        $region19: #{tpu_custom_call.1} parent=11 // pred_region
          %s225 = smul.u32 2, %s25
          %p226 = scmp.lt.s32.totalorder %s225, 1
          %s227 = scalar_select %p226, %s225, 1
          %s228 = smul.addr %s227, 4
          %s229 = scalar_lea.vmem %s1, %s228
          %s230 = smul.u32 2, %s25
        $region20: #{tpu_custom_call.1} parent=11 // pred_fallthru
          _
      $region12: #{tpu_custom_call.1} parent=5 // pred_fallthru
        _
      %p231 = scmp.lt.s32.totalorder %s16, 2
      // Predicated region
      $region21: #{tpu_custom_call.1} parent=5 // pred_check
        %p232 = pneg %p231
      $region22: #{tpu_custom_call.1} parent=5 // pred_check_branch
        %234 = sbr.rel (%p232) target = $region24
      $region23: #{tpu_custom_call.1} parent=5 // pred_region
        // Predicated region
        $region25: #{tpu_custom_call.1} parent=23 // pred_check
          %p235 = pneg %p102
        $region26: #{tpu_custom_call.1} parent=23 // pred_check_branch
          %237 = sbr.rel (%p235) target = $region28
        $region27: #{tpu_custom_call.1} parent=23 // pred_region
          %s238 = sand.u32 %s16, 1
          %s239 = scalar_lea.sflag [#allocation8], %s238
          %s240 = sand.u32 %s92, 1
          %s241 = smul.addr %s240, 64
          %s242 = scalar_lea.vmem [#allocation7], %s241
          %s243 = smul.u32 2, %s23
          %245 = vsyncadd %s239, 0
          %s246 = smul.addr %s24, 8
          %s247 = sadd.s32 %s243, %s246
          %s248 = smul.addr %s247, 8
          %s249 = scalar_lea.hbm %s2, %s248
          %s250 = sshll.u32 %s249, 4
          %s251 = int_to_ptr.hbm [resolvable:$true] %s250
          %s252 = sshll.u32 %s242, 4
          %s253 = int_to_ptr.vmem [resolvable:$true] %s252
          %258 = dma.hbm_to_vmem [thread:$0]  %s251, 1024, %s253, %s239, 256, 256, 16
        $region28: #{tpu_custom_call.1} parent=23 // pred_fallthru
          _
        // Predicated region
        $region29: #{tpu_custom_call.1} parent=23 // pred_check
          %p259 = pneg %p130
        $region30: #{tpu_custom_call.1} parent=23 // pred_check_branch
          %261 = sbr.rel (%p259) target = $region32
        $region31: #{tpu_custom_call.1} parent=23 // pred_region
          %s262 = sand.u32 %s16, 1
          %s263 = scalar_lea.sflag [#allocation8], %s262
          %s264 = sand.u32 %s120, 1
          %s265 = smul.addr %s264, 64
          %s266 = scalar_lea.vmem [#allocation9], %s265
          %s267 = smul.u32 2, %s23
          %269 = vsyncadd %s263, 0
          %s270 = smul.addr %s24, 8
          %s271 = sadd.s32 %s267, %s270
          %s272 = smul.addr %s271, 8
          %s273 = scalar_lea.hbm %s3, %s272
          %s274 = sshll.u32 %s273, 4
          %s275 = int_to_ptr.hbm [resolvable:$true] %s274
          %s276 = sshll.u32 %s266, 4
          %s277 = int_to_ptr.vmem [resolvable:$true] %s276
          %282 = dma.hbm_to_vmem [thread:$0]  %s275, 1024, %s277, %s263, 256, 256, 16
        $region32: #{tpu_custom_call.1} parent=23 // pred_fallthru
          _
        // Predicated region
        $region33: #{tpu_custom_call.1} parent=23 // pred_check
          %p283 = pneg %p158
        $region34: #{tpu_custom_call.1} parent=23 // pred_check_branch
          %285 = sbr.rel (%p283) target = $region36
        $region35: #{tpu_custom_call.1} parent=23 // pred_region
          %s286 = smul.u32 2, %s23
          %p287 = scmp.lt.s32.totalorder %s24, 1
          %s288 = scalar_select %p287, %s24, 1
          %p289 = scmp.lt.s32.totalorder %s286, 1
          %s290 = scalar_select %p289, %s286, 1
          %s291 = smul.addr %s288, 2
          %s292 = sadd.s32 %s290, %s291
          %s293 = smul.addr %s292, 8
          %s294 = scalar_lea.vmem %s4, %s293
          %s295 = smul.u32 2, %s23
        $region36: #{tpu_custom_call.1} parent=23 // pred_fallthru
          _
      $region24: #{tpu_custom_call.1} parent=5 // pred_fallthru
        _
      %p296 = scmp.le.s32.totalorder 1, %s16
      %p297 = scmp.lt.s32.totalorder %s16, 3
      %p298 = pnand %p296, %p297
      %p299 = pneg %p298
      // Predicated region
      $region37: #{tpu_custom_call.1} parent=5 // pred_check
        _
      $region38: #{tpu_custom_call.1} parent=5 // pred_check_branch
        %301 = sbr.rel (%p298) target = $region40
      $region39: #{tpu_custom_call.1} parent=5 // pred_region
        %s302 = ssub.s32 %s16, 1
        // Predicated region
        $region41: #{tpu_custom_call.1} parent=39 // pred_check
          %p303 = pneg %p54
        $region42: #{tpu_custom_call.1} parent=39 // pred_check_branch
          %305 = sbr.rel (%p303) target = $region44
        $region43: #{tpu_custom_call.1} parent=39 // pred_region
          %307 = dma.done [#allocation5], 1024
        $region44: #{tpu_custom_call.1} parent=39 // pred_fallthru
          _
        %s308 = sand.u32 %s21, 1
        %s309 = scalar_lea.sflag [#allocation8], %s308
        %s310 = sand.u32 %s95, 1
        %s311 = smul.addr %s310, 64
        %s312 = scalar_lea.vmem [#allocation7], %s311
        // Predicated region
        $region45: #{tpu_custom_call.1} parent=39 // pred_check
          %p313 = pneg %p108
        $region46: #{tpu_custom_call.1} parent=39 // pred_check_branch
          %315 = sbr.rel (%p313) target = $region48
        $region47: #{tpu_custom_call.1} parent=39 // pred_region
          %317 = dma.done %s309, 1024
        $region48: #{tpu_custom_call.1} parent=39 // pred_fallthru
          _
        %s318 = sand.u32 %s21, 1
        %s319 = scalar_lea.sflag [#allocation8], %s318
        %s320 = sand.u32 %s123, 1
        %s321 = smul.addr %s320, 64
        %s322 = scalar_lea.vmem [#allocation9], %s321
        // Predicated region
        $region49: #{tpu_custom_call.1} parent=39 // pred_check
          %p323 = pneg %p136
        $region50: #{tpu_custom_call.1} parent=39 // pred_check_branch
          %325 = sbr.rel (%p323) target = $region52
        $region51: #{tpu_custom_call.1} parent=39 // pred_region
          %327 = dma.done %s319, 1024
        $region52: #{tpu_custom_call.1} parent=39 // pred_fallthru
          _
        %p328 = pneg %p54
        %p329 = pneg %p51
        %s330 = smul.u32 2, %s25
        %p331 = scmp.lt.s32.totalorder %s330, 1
        %s332 = scalar_select %p331, %s330, 1
        %s333 = smul.addr %s332, 4
        %s334 = scalar_lea.vmem %s1, %s333
        %p335 = pneg %p80
        %p336 = pneg %p77
        %s337 = sand.u32 %s21, 1
        %s338 = scalar_lea.sflag [#allocation8], %s337
        %s339 = sand.u32 %s95, 1
        %s340 = smul.addr %s339, 64
        %s341 = scalar_lea.vmem [#allocation7], %s340
        %p342 = pneg %p108
        %p343 = pneg %p105
        %s344 = sand.u32 %s21, 1
        %s345 = scalar_lea.sflag [#allocation8], %s344
        %s346 = sand.u32 %s123, 1
        %s347 = smul.addr %s346, 64
        %s348 = scalar_lea.vmem [#allocation9], %s347
        %p349 = pneg %p136
        %p350 = pneg %p133
        %s351 = smul.u32 2, %s25
        %p352 = scmp.lt.s32.totalorder %s26, 1
        %s353 = scalar_select %p352, %s26, 1
        %p354 = scmp.lt.s32.totalorder %s351, 1
        %s355 = scalar_select %p354, %s351, 1
        %s356 = smul.addr %s353, 2
        %s357 = sadd.s32 %s355, %s356
        %s358 = smul.addr %s357, 8
        %s359 = scalar_lea.vmem %s4, %s358
        %p360 = pneg %p164
        %p361 = pneg %p161
        %p362 = pneg %p190
        %p363 = pneg %p187
        %s364 = smul.u32 2, %s25
        %s365 = smul.u32 2, %s25
        %p366 = scmp.lt.s32.totalorder %s365, 1
        %s367 = scalar_select %p366, %s365, 1
        %s368 = smul.addr %s367, 4
        %s369 = scalar_lea.vmem %s1, %s368
        %s370 = smul.u32 2, %s25
        %s371 = smul.u32 2, %s25
        %s372 = smul.u32 2, %s25
        %s373 = smul.u32 2, %s25
        %p374 = scmp.lt.s32.totalorder %s26, 1
        %s375 = scalar_select %p374, %s26, 1
        %p376 = scmp.lt.s32.totalorder %s373, 1
        %s377 = scalar_select %p376, %s373, 1
        %s378 = smul.addr %s375, 2
        %s379 = sadd.s32 %s377, %s378
        %s380 = smul.addr %s379, 8
        %s381 = scalar_lea.vmem %s4, %s380
        %s382 = smul.u32 2, %s25
        %s383 = smul.u32 2, %s25
        %v384 = vld [vmem:[#allocation4] sm:$0xff]
        %v385 = vld [vmem:[#allocation4 + $0x8] sm:$0xff]
        %v386 = vld [vmem:[#allocation4 + $0x10] sm:$0xff]
        %v387 = vld [vmem:[#allocation4 + $0x18] sm:$0xff]
        %v388 = vld [vmem:[#allocation4 + $0x20] sm:$0xff]
        %v389 = vld [vmem:[#allocation4 + $0x28] sm:$0xff]
        %v390 = vld [vmem:[#allocation4 + $0x30] sm:$0xff]
        %v391 = vld [vmem:[#allocation4 + $0x38] sm:$0xff]
        %v392 = vld [vmem:[%s369] ss:$4 sm:$0x3]
        %s393 = scalar_lea.vmem %s381, 2
        %v394 = vld [vmem:[%s393] ss:$8 sm:$0x3]
        %s395 = scalar_lea.vmem %s381, 3
        %v396 = vld [vmem:[%s395] ss:$8 sm:$0x3]
        %p397 = scmp.eq.s32.totalorder %s26, 0
        // Predicated region
        $region53: #{tpu_custom_call.1} parent=39 // pred_check
          %p398 = pneg %p397
        $region54: #{tpu_custom_call.1} parent=39 // pred_check_branch
          %400 = sbr.rel (%p398) target = $region56
        $region55: #{tpu_custom_call.1} parent=39 // pred_region
          %401 = vst [vmem:[#allocation10] sm:$0xff] 0.0
          %402 = vst [vmem:[#allocation10 + $0x8] sm:$0xff] 0.0
          %403 = vst [vmem:[#allocation10 + $0x10] sm:$0xff] 0.0
          %404 = vst [vmem:[#allocation10 + $0x18] sm:$0xff] 0.0
          %405 = vst [vmem:[#allocation10 + $0x20] sm:$0x3] 0.0
          %406 = vst [vmem:[#allocation10 + $0x28] sm:$0x3] 0.0
          %v407 = vmul.f32 %v384, %v384
          %v408 = vmul.f32 %v385, %v385
          %v409 = vmul.f32 %v386, %v386
          %v410 = vmul.f32 %v387, %v387
          %v411 = vmul.f32 %v388, %v388
          %v412 = vmul.f32 %v389, %v389
          %v413 = vmul.f32 %v390, %v390
          %v414 = vmul.f32 %v391, %v391
          %v415 = vadd.f32 %v407, %v409
          %v416 = vadd.f32 %v415, %v411
          %v417 = vadd.f32 %v416, %v413
          %v418 = vrot.slane %v417, 4
          %v419 = vadd.f32 %v417, %v418
          %v420 = vrot.slane %v419, 2
          %v421 = vadd.f32 %v419, %v420
          %v422 = vrot.slane %v421, 1
          %v423 = vadd.f32 %v421, %v422
          %v424 = vadd.f32 %v408, %v410
          %v425 = vadd.f32 %v424, %v412
          %v426 = vadd.f32 %v425, %v414
          %v427 = vrot.slane %v426, 4
          %v428 = vadd.f32 %v426, %v427
          %v429 = vrot.slane %v428, 2
          %v430 = vadd.f32 %v428, %v429
          %v431 = vrot.slane %v430, 1
          %v432 = vadd.f32 %v430, %v431
          %v435 = vrot.slane %v432, 7
          %vm436 = vcmask 1040384
          %v437 = vsel %vm436, %v423, %v435
          %v439 = vlaneseq
          %vm440 = vcmp.ge.s32.totalorder %v439, 0
          %vm441 = vcmp.lt.s32.totalorder %v439, 256
          %vm442 = vmand %vm440, %vm441
          %443 = vst.msk [vmem:[#allocation2] sm:$0x3] %vm442, %v437
          %444 = vst.msk [vmem:[#allocation3] sm:$0x3] %vm442, %v394
        $region56: #{tpu_custom_call.1} parent=39 // pred_fallthru
          _
        %p445 = scmp.gt.s32.totalorder %s26, 0
        // Predicated region
        $region57: #{tpu_custom_call.1} parent=39 // pred_check
          %p446 = pneg %p445
        $region58: #{tpu_custom_call.1} parent=39 // pred_check_branch
          %448 = sbr.rel (%p446) target = $region60
        $region59: #{tpu_custom_call.1} parent=39 // pred_region
          %v449 = vld [vmem:[#allocation3] sm:$0x3]
          %v450 = vmax.f32 %v449, %v394
          %v451 = vlaneseq
          %vm452 = vcmp.ge.s32.totalorder %v451, 0
          %vm453 = vcmp.lt.s32.totalorder %v451, 256
          %vm454 = vmand %vm452, %vm453
          %455 = vst.msk [vmem:[#allocation3] sm:$0x3] %vm454, %v450
        $region60: #{tpu_custom_call.1} parent=39 // pred_fallthru
          _
        %v456 = vld [vmem:[#allocation2] sm:$0x3]
        %v457 = vld [vmem:[%s312] sm:$0xff]
        %v458 = vld [vmem:[%s312 + $0x8] sm:$0xff]
        %v459 = vld [vmem:[%s312 + $0x10] sm:$0xff]
        %v460 = vld [vmem:[%s312 + $0x18] sm:$0xff]
        %v461 = vld [vmem:[%s312 + $0x20] sm:$0xff]
        %v462 = vld [vmem:[%s312 + $0x28] sm:$0xff]
        %v463 = vld [vmem:[%s312 + $0x30] sm:$0xff]
        %v464 = vld [vmem:[%s312 + $0x38] sm:$0xff]
        %v465 = vmul.f32 %v392, %v394
        %v466 = vsub.f32 %v384, %v457
        %v467 = vsub.f32 %v385, %v458
        %v468 = vsub.f32 %v386, %v459
        %v469 = vsub.f32 %v387, %v460
        %v470 = vsub.f32 %v388, %v461
        %v471 = vsub.f32 %v389, %v462
        %v472 = vsub.f32 %v390, %v463
        %v473 = vsub.f32 %v391, %v464
        %v474 = vmul.f32 %v466, %v466
        %v475 = vmul.f32 %v467, %v467
        %v476 = vmul.f32 %v468, %v468
        %v477 = vmul.f32 %v469, %v469
        %v478 = vmul.f32 %v470, %v470
        %v479 = vmul.f32 %v471, %v471
        %v480 = vmul.f32 %v472, %v472
        %v481 = vmul.f32 %v473, %v473
        %v482 = vadd.f32 %v474, %v476
        %v483 = vadd.f32 %v482, %v478
        %v484 = vadd.f32 %v483, %v480
        %v485 = vrot.slane %v484, 4
        %v486 = vadd.f32 %v484, %v485
        %v487 = vrot.slane %v486, 2
        %v488 = vadd.f32 %v486, %v487
        %v489 = vrot.slane %v488, 1
        %v490 = vadd.f32 %v488, %v489
        %v491 = vadd.f32 %v475, %v477
        %v492 = vadd.f32 %v491, %v479
        %v493 = vadd.f32 %v492, %v481
        %v494 = vrot.slane %v493, 4
        %v495 = vadd.f32 %v493, %v494
        %v496 = vrot.slane %v495, 2
        %v497 = vadd.f32 %v495, %v496
        %v498 = vrot.slane %v497, 1
        %v499 = vadd.f32 %v497, %v498
        %v500 = vmul.f32 %v490, 0.03125
        %v501 = vmul.f32 %v499, 0.03125
        %v504 = vrot.slane %v501, 7
        %vm505 = vcmask 1040384
        %v506 = vsel %vm505, %v500, %v504
        %v508 = vmul.f32 %v465, %v506
        %v509 = vmul.f32 %v384, %v457
        %v510 = vmul.f32 %v385, %v458
        %v511 = vmul.f32 %v386, %v459
        %v512 = vmul.f32 %v387, %v460
        %v513 = vmul.f32 %v388, %v461
        %v514 = vmul.f32 %v389, %v462
        %v515 = vmul.f32 %v390, %v463
        %v516 = vmul.f32 %v391, %v464
        %v517 = vadd.f32 %v509, %v511
        %v518 = vadd.f32 %v517, %v513
        %v519 = vadd.f32 %v518, %v515
        %v520 = vrot.slane %v519, 4
        %v521 = vadd.f32 %v519, %v520
        %v522 = vrot.slane %v521, 2
        %v523 = vadd.f32 %v521, %v522
        %v524 = vrot.slane %v523, 1
        %v525 = vadd.f32 %v523, %v524
        %v526 = vadd.f32 %v510, %v512
        %v527 = vadd.f32 %v526, %v514
        %v528 = vadd.f32 %v527, %v516
        %v529 = vrot.slane %v528, 4
        %v530 = vadd.f32 %v528, %v529
        %v531 = vrot.slane %v530, 2
        %v532 = vadd.f32 %v530, %v531
        %v533 = vrot.slane %v532, 1
        %v534 = vadd.f32 %v532, %v533
        %v535 = vmul.f32 %v457, %v457
        %v536 = vmul.f32 %v458, %v458
        %v537 = vmul.f32 %v459, %v459
        %v538 = vmul.f32 %v460, %v460
        %v539 = vmul.f32 %v461, %v461
        %v540 = vmul.f32 %v462, %v462
        %v541 = vmul.f32 %v463, %v463
        %v542 = vmul.f32 %v464, %v464
        %v543 = vadd.f32 %v535, %v537
        %v544 = vadd.f32 %v543, %v539
        %v545 = vadd.f32 %v544, %v541
        %v546 = vrot.slane %v545, 4
        %v547 = vadd.f32 %v545, %v546
        %v548 = vrot.slane %v547, 2
        %v549 = vadd.f32 %v547, %v548
        %v550 = vrot.slane %v549, 1
        %v551 = vadd.f32 %v549, %v550
        %v552 = vadd.f32 %v536, %v538
        %v553 = vadd.f32 %v552, %v540
        %v554 = vadd.f32 %v553, %v542
        %v555 = vrot.slane %v554, 4
        %v556 = vadd.f32 %v554, %v555
        %v557 = vrot.slane %v556, 2
        %v558 = vadd.f32 %v556, %v557
        %v559 = vrot.slane %v558, 1
        %v560 = vadd.f32 %v558, %v559
        %v563 = vrot.slane %v560, 7
        %v564 = vsel %vm505, %v551, %v563
        %v566 = vmul.f32 %v456, %v564
        %v567 = vmax.f32 %v566, 1e-16
        %v568 = vrsqrt.pop %v567
        %v569 = vmul.f32 %v568, %v567
        %v570 = vmul.f32 %v569, %v568
        %v571 = vmul.f32 0.5, %v570
        %v572 = vsub.f32 1.5, %v571
        %v573 = vmul.f32 %v568, %v572
        %vm574 = vweird.f32 %v567
        %vm575 = vweird.f32 %v568
        %vm576 = vmor %vm574, %vm575
        %v577 = vsel %vm576, %v568, %v573
        %v579 = vperm.slane %v577, 0
        %v580 = vperm.slane %v577, 1
        %v583 = vmul.f32 %v525, %v579
        %v584 = vmul.f32 %v534, %v580
        %v585 = vsub.f32 1.0, %v583
        %v586 = vsub.f32 1.0, %v584
        %v589 = vrot.slane %v586, 7
        %v590 = vsel %vm505, %v585, %v589
        %v592 = vmul.f32 %v465, %v590
        %v593 = vld [vmem:[%s322] sm:$0xff]
        %v594 = vld [vmem:[%s322 + $0x8] sm:$0xff]
        %v595 = vld [vmem:[%s322 + $0x10] sm:$0xff]
        %v596 = vld [vmem:[%s322 + $0x18] sm:$0xff]
        %v597 = vld [vmem:[%s322 + $0x20] sm:$0xff]
        %v598 = vld [vmem:[%s322 + $0x28] sm:$0xff]
        %v599 = vld [vmem:[%s322 + $0x30] sm:$0xff]
        %v600 = vld [vmem:[%s322 + $0x38] sm:$0xff]
        %v601 = vmul.f32 %v392, %v396
        %v602 = vsub.f32 %v384, %v593
        %v603 = vsub.f32 %v385, %v594
        %v604 = vsub.f32 %v386, %v595
        %v605 = vsub.f32 %v387, %v596
        %v606 = vsub.f32 %v388, %v597
        %v607 = vsub.f32 %v389, %v598
        %v608 = vsub.f32 %v390, %v599
        %v609 = vsub.f32 %v391, %v600
        %v610 = vmul.f32 %v602, %v602
        %v611 = vmul.f32 %v603, %v603
        %v612 = vmul.f32 %v604, %v604
        %v613 = vmul.f32 %v605, %v605
        %v614 = vmul.f32 %v606, %v606
        %v615 = vmul.f32 %v607, %v607
        %v616 = vmul.f32 %v608, %v608
        %v617 = vmul.f32 %v609, %v609
        %v618 = vadd.f32 %v610, %v612
        %v619 = vadd.f32 %v618, %v614
        %v620 = vadd.f32 %v619, %v616
        %v621 = vrot.slane %v620, 4
        %v622 = vadd.f32 %v620, %v621
        %v623 = vrot.slane %v622, 2
        %v624 = vadd.f32 %v622, %v623
        %v625 = vrot.slane %v624, 1
        %v626 = vadd.f32 %v624, %v625
        %v627 = vadd.f32 %v611, %v613
        %v628 = vadd.f32 %v627, %v615
        %v629 = vadd.f32 %v628, %v617
        %v630 = vrot.slane %v629, 4
        %v631 = vadd.f32 %v629, %v630
        %v632 = vrot.slane %v631, 2
        %v633 = vadd.f32 %v631, %v632
        %v634 = vrot.slane %v633, 1
        %v635 = vadd.f32 %v633, %v634
        %v636 = vmul.f32 %v626, 0.03125
        %v637 = vmul.f32 %v635, 0.03125
        %v640 = vrot.slane %v637, 7
        %v641 = vsel %vm505, %v636, %v640
        %v643 = vmul.f32 %v601, %v641
        %v644 = vmul.f32 %v384, %v593
        %v645 = vmul.f32 %v385, %v594
        %v646 = vmul.f32 %v386, %v595
        %v647 = vmul.f32 %v387, %v596
        %v648 = vmul.f32 %v388, %v597
        %v649 = vmul.f32 %v389, %v598
        %v650 = vmul.f32 %v390, %v599
        %v651 = vmul.f32 %v391, %v600
        %v652 = vadd.f32 %v644, %v646
        %v653 = vadd.f32 %v652, %v648
        %v654 = vadd.f32 %v653, %v650
        %v655 = vrot.slane %v654, 4
        %v656 = vadd.f32 %v654, %v655
        %v657 = vrot.slane %v656, 2
        %v658 = vadd.f32 %v656, %v657
        %v659 = vrot.slane %v658, 1
        %v660 = vadd.f32 %v658, %v659
        %v661 = vadd.f32 %v645, %v647
        %v662 = vadd.f32 %v661, %v649
        %v663 = vadd.f32 %v662, %v651
        %v664 = vrot.slane %v663, 4
        %v665 = vadd.f32 %v663, %v664
        %v666 = vrot.slane %v665, 2
        %v667 = vadd.f32 %v665, %v666
        %v668 = vrot.slane %v667, 1
        %v669 = vadd.f32 %v667, %v668
        %v670 = vmul.f32 %v593, %v593
        %v671 = vmul.f32 %v594, %v594
        %v672 = vmul.f32 %v595, %v595
        %v673 = vmul.f32 %v596, %v596
        %v674 = vmul.f32 %v597, %v597
        %v675 = vmul.f32 %v598, %v598
        %v676 = vmul.f32 %v599, %v599
        %v677 = vmul.f32 %v600, %v600
        %v678 = vadd.f32 %v670, %v672
        %v679 = vadd.f32 %v678, %v674
        %v680 = vadd.f32 %v679, %v676
        %v681 = vrot.slane %v680, 4
        %v682 = vadd.f32 %v680, %v681
        %v683 = vrot.slane %v682, 2
        %v684 = vadd.f32 %v682, %v683
        %v685 = vrot.slane %v684, 1
        %v686 = vadd.f32 %v684, %v685
        %v687 = vadd.f32 %v671, %v673
        %v688 = vadd.f32 %v687, %v675
        %v689 = vadd.f32 %v688, %v677
        %v690 = vrot.slane %v689, 4
        %v691 = vadd.f32 %v689, %v690
        %v692 = vrot.slane %v691, 2
        %v693 = vadd.f32 %v691, %v692
        %v694 = vrot.slane %v693, 1
        %v695 = vadd.f32 %v693, %v694
        %v698 = vrot.slane %v695, 7
        %v699 = vsel %vm505, %v686, %v698
        %v701 = vmul.f32 %v456, %v699
        %v702 = vmax.f32 %v701, 1e-16
        %v703 = vrsqrt.pop %v702
        %v704 = vmul.f32 %v703, %v702
        %v705 = vmul.f32 %v704, %v703
        %v706 = vmul.f32 0.5, %v705
        %v707 = vsub.f32 1.5, %v706
        %v708 = vmul.f32 %v703, %v707
        %vm709 = vweird.f32 %v702
        %vm710 = vweird.f32 %v703
        %vm711 = vmor %vm709, %vm710
        %v712 = vsel %vm711, %v703, %v708
        %v714 = vperm.slane %v712, 0
        %v715 = vperm.slane %v712, 1
        %v718 = vmul.f32 %v660, %v714
        %v719 = vmul.f32 %v669, %v715
        %v720 = vsub.f32 1.0, %v718
        %v721 = vsub.f32 1.0, %v719
        %v724 = vrot.slane %v721, 7
        %v725 = vsel %vm505, %v720, %v724
        %v727 = vmul.f32 %v601, %v725
        %v728 = vld [vmem:[%s381] ss:$8 sm:$0x3]
        %v729 = vsub.f32 %v392, %v728
        %v730 = vand.u32 2147483647, %v729
        %vm731 = vcmp.le.f32.partialorder %v730, 1.0
        %v732 = vmul.f32 %v729, 0.5
        %v733 = vmul.f32 %v732, %v729
        %v734 = vsub.f32 %v730, 0.5
        %v735 = vsel %vm731, %v733, %v734
        %v736 = vmul.f32 %v394, %v735
        %s737 = scalar_lea.vmem %s381, 1
        %v738 = vld [vmem:[%s737] ss:$8 sm:$0x3]
        %v739 = vsub.f32 %v392, %v738
        %v740 = vand.u32 2147483647, %v739
        %vm741 = vcmp.le.f32.partialorder %v740, 1.0
        %v742 = vmul.f32 %v739, 0.5
        %v743 = vmul.f32 %v742, %v739
        %v744 = vsub.f32 %v740, 0.5
        %v745 = vsel %vm741, %v743, %v744
        %v746 = vmul.f32 %v396, %v745
        %s747 = scalar_lea.vmem %s381, 4
        %v748 = vld [vmem:[%s747] ss:$8 sm:$0x3]
        %s749 = scalar_lea.vmem %s381, 5
        %v750 = vld [vmem:[%s749] ss:$8 sm:$0x3]
        %v751 = vmul.f32 %v748, %v748
        %v752 = vmul.f32 %v750, %v750
        %v753 = vadd.f32 %v751, %v752
        %v754 = vmul.f32 %v394, %v753
        %v755 = vld [vmem:[#allocation10] ss:$8 sm:$0x3]
        %v756 = vadd.f32 %v755, %v508
        %v757 = vlaneseq
        %vm758 = vcmp.ge.s32.totalorder %v757, 0
        %vm759 = vcmp.lt.s32.totalorder %v757, 256
        %vm760 = vmand %vm758, %vm759
        %761 = vst.msk [vmem:[#allocation10] ss:$8 sm:$0x3] %vm760, %v756
        %762 = vst.msk [vmem:[#allocation10] ss:$8 sm:$0x0] %vm760, %v756
        %s763 = scalar_lea.vmem [#allocation10], 1
        %v764 = vld [vmem:[%s763] ss:$8 sm:$0x3]
        %v765 = vadd.f32 %v764, %v592
        %766 = vst.msk [vmem:[%s763] ss:$8 sm:$0x3] %vm760, %v765
        %767 = vst.msk [vmem:[%s763] ss:$8 sm:$0x0] %vm760, %v765
        %s768 = scalar_lea.vmem [#allocation10], 2
        %v769 = vld [vmem:[%s768] ss:$8 sm:$0x3]
        %v770 = vadd.f32 %v769, %v465
        %771 = vst.msk [vmem:[%s768] ss:$8 sm:$0x3] %vm760, %v770
        %772 = vst.msk [vmem:[%s768] ss:$8 sm:$0x0] %vm760, %v770
        %s773 = scalar_lea.vmem [#allocation10], 3
        %v774 = vld [vmem:[%s773] ss:$8 sm:$0x3]
        %v775 = vadd.f32 %v774, %v643
        %776 = vst.msk [vmem:[%s773] ss:$8 sm:$0x3] %vm760, %v775
        %777 = vst.msk [vmem:[%s773] ss:$8 sm:$0x0] %vm760, %v775
        %s778 = scalar_lea.vmem [#allocation10], 4
        %v779 = vld [vmem:[%s778] ss:$8 sm:$0x3]
        %v780 = vadd.f32 %v779, %v727
        %781 = vst.msk [vmem:[%s778] ss:$8 sm:$0x3] %vm760, %v780
        %782 = vst.msk [vmem:[%s778] ss:$8 sm:$0x0] %vm760, %v780
        %s783 = scalar_lea.vmem [#allocation10], 5
        %v784 = vld [vmem:[%s783] ss:$8 sm:$0x3]
        %v785 = vadd.f32 %v784, %v601
        %786 = vst.msk [vmem:[%s783] ss:$8 sm:$0x3] %vm760, %v785
        %787 = vst.msk [vmem:[%s783] ss:$8 sm:$0x0] %vm760, %v785
        %s788 = scalar_lea.vmem [#allocation10], 6
        %v789 = vld [vmem:[%s788] ss:$8 sm:$0x3]
        %v790 = vadd.f32 %v789, %v736
        %791 = vst.msk [vmem:[%s788] ss:$8 sm:$0x3] %vm760, %v790
        %792 = vst.msk [vmem:[%s788] ss:$8 sm:$0x0] %vm760, %v790
        %s793 = scalar_lea.vmem [#allocation10], 7
        %v794 = vld [vmem:[%s793] ss:$8 sm:$0x3]
        %v795 = vadd.f32 %v794, %v394
        %796 = vst.msk [vmem:[%s793] ss:$8 sm:$0x3] %vm760, %v795
        %797 = vst.msk [vmem:[%s793] ss:$8 sm:$0x0] %vm760, %v795
        %s798 = scalar_lea.vmem [#allocation10], 16
        %v799 = vld [vmem:[%s798] ss:$8 sm:$0x3]
        %v800 = vadd.f32 %v799, %v746
        %801 = vst.msk [vmem:[%s798] ss:$8 sm:$0x3] %vm760, %v800
        %802 = vst.msk [vmem:[%s798] ss:$8 sm:$0x0] %vm760, %v800
        %s803 = scalar_lea.vmem [#allocation10], 17
        %v804 = vld [vmem:[%s803] ss:$8 sm:$0x3]
        %v805 = vadd.f32 %v804, %v396
        %806 = vst.msk [vmem:[%s803] ss:$8 sm:$0x3] %vm760, %v805
        %807 = vst.msk [vmem:[%s803] ss:$8 sm:$0x0] %vm760, %v805
        %s808 = scalar_lea.vmem [#allocation10], 18
        %v809 = vld [vmem:[%s808] ss:$8 sm:$0x3]
        %v810 = vadd.f32 %v809, %v754
        %811 = vst.msk [vmem:[%s808] ss:$8 sm:$0x3] %vm760, %v810
        %812 = vst.msk [vmem:[%s808] ss:$8 sm:$0x0] %vm760, %v810
        %p813 = scmp.eq.s32.totalorder %s26, 1
        // Predicated region
        $region61: #{tpu_custom_call.1} parent=39 // pred_check
          %p814 = pneg %p813
        $region62: #{tpu_custom_call.1} parent=39 // pred_check_branch
          %816 = sbr.rel (%p814) target = $region64
        $region63: #{tpu_custom_call.1} parent=39 // pred_region
          %v817 = vsub.f32 1.0, %v392
          %v818 = vand.u32 2147483647, %v384
          %v819 = vand.u32 2147483647, %v385
          %v820 = vand.u32 2147483647, %v386
          %v821 = vand.u32 2147483647, %v387
          %v822 = vand.u32 2147483647, %v388
          %v823 = vand.u32 2147483647, %v389
          %v824 = vand.u32 2147483647, %v390
          %v825 = vand.u32 2147483647, %v391
          %v826 = vadd.f32 %v818, %v820
          %v827 = vadd.f32 %v826, %v822
          %v828 = vadd.f32 %v827, %v824
          %v829 = vrot.slane %v828, 4
          %v830 = vadd.f32 %v828, %v829
          %v831 = vrot.slane %v830, 2
          %v832 = vadd.f32 %v830, %v831
          %v833 = vrot.slane %v832, 1
          %v834 = vadd.f32 %v832, %v833
          %v835 = vadd.f32 %v819, %v821
          %v836 = vadd.f32 %v835, %v823
          %v837 = vadd.f32 %v836, %v825
          %v838 = vrot.slane %v837, 4
          %v839 = vadd.f32 %v837, %v838
          %v840 = vrot.slane %v839, 2
          %v841 = vadd.f32 %v839, %v840
          %v842 = vrot.slane %v841, 1
          %v843 = vadd.f32 %v841, %v842
          %v844 = vld [vmem:[#allocation3] sm:$0x3]
          %v845 = vmul.f32 %v844, %v392
          %s846 = scalar_lea.vmem %s369, 1
          %v847 = vld [vmem:[%s846] ss:$4 sm:$0x3]
          %s848 = scalar_lea.vmem %s369, 2
          %v849 = vld [vmem:[%s848] ss:$4 sm:$0x3]
          %v852 = vrot.slane %v843, 7
          %v853 = vsel %vm505, %v834, %v852
          %v855 = vmul.f32 %v817, %v853
          %s856 = scalar_lea.vmem [#allocation10], 19
          %857 = vst.msk [vmem:[%s856] ss:$8 sm:$0x3] %vm760, %v855
          %858 = vst.msk [vmem:[%s856] ss:$8 sm:$0x0] %vm760, %v855
          %s859 = scalar_lea.vmem [#allocation10], 20
          %860 = vst.msk [vmem:[%s859] ss:$8 sm:$0x3] %vm760, %v817
          %861 = vst.msk [vmem:[%s859] ss:$8 sm:$0x0] %vm760, %v817
          %v862 = vand.u32 2147483647, %v392
          %s863 = scalar_lea.vmem [#allocation10], 21
          %864 = vst.msk [vmem:[%s863] ss:$8 sm:$0x3] %vm760, %v862
          %865 = vst.msk [vmem:[%s863] ss:$8 sm:$0x0] %vm760, %v862
          %v866 = vmul.f32 %v392, 5.0
          %v867 = vxor.u32 %v866, 2147483648
          %v868 = vmul.f32 %v867, 1.442695
          %v869 = vpow.pop %v868
          %v870 = vadd.f32 %v869, 1.0
          %v871 = vrcp.pop %v870
          %v872 = vmul.f32 %v870, %v871
          %v873 = vsub.f32 1.0, %v872
          %v874 = vmul.f32 %v871, %v873
          %v875 = vadd.f32 %v871, %v874
          %vm876 = vweird.f32 %v870
          %vm877 = vweird.f32 %v871
          %vm878 = vmor %vm876, %vm877
          %v879 = vsel %vm878, %v871, %v875
          %v880 = vand.u32 2147483647, %v870
          %vm881 = vcmp.eq.f32.partialorder %v880, 8.507059e+37
          %v882 = vand.u32 %v870, 2147483648
          %v883 = vor.u32 1.1754944e-38, %v882
          %v884 = vsel %vm881, %v883, %v879
          %v885 = vmul.f32 1.0, %v884
          %v886 = vsub.f32 %v885, 0.5
          %v887 = vmul.f32 %v886, 2.0
          %s888 = scalar_lea.vmem [#allocation10], 22
          %889 = vst.msk [vmem:[%s888] ss:$8 sm:$0x3] %vm760, %v887
          %890 = vst.msk [vmem:[%s888] ss:$8 sm:$0x0] %vm760, %v887
          %v891 = vmul.f32 %v845, %v847
          %s892 = scalar_lea.vmem [#allocation10], 23
          %893 = vst.msk [vmem:[%s892] ss:$8 sm:$0x3] %vm760, %v891
          %894 = vst.msk [vmem:[%s892] ss:$8 sm:$0x0] %vm760, %v891
          %v895 = vmul.f32 %v845, %v849
          %s896 = scalar_lea.vmem [#allocation10], 32
          %897 = vst.msk [vmem:[%s896] ss:$8 sm:$0x3] %vm760, %v895
          %898 = vst.msk [vmem:[%s896] ss:$8 sm:$0x0] %vm760, %v895
          %s899 = scalar_lea.vmem [#allocation10], 33
          %900 = vst.msk [vmem:[%s899] ss:$8 sm:$0x3] %vm760, %v845
          %901 = vst.msk [vmem:[%s899] ss:$8 sm:$0x0] %vm760, %v845
        $region64: #{tpu_custom_call.1} parent=39 // pred_fallthru
          _
        // Predicated region
        $region65: #{tpu_custom_call.1} parent=39 // pred_check
          %p902 = pneg %p187
        $region66: #{tpu_custom_call.1} parent=39 // pred_check_branch
          %904 = sbr.rel (%p902) target = $region68
        $region67: #{tpu_custom_call.1} parent=39 // pred_region
          %s905 = smul.u32 2, %s25
          %907 = vsyncadd [#allocation6], 0
          %s908 = smul.addr %s905, 8
          %s909 = scalar_lea.hbm %s5, %s908
          %s910 = sshll.u32 [#allocation10], 4
          %s911 = int_to_ptr.vmem [resolvable:$true] %s910
          %s912 = sshll.u32 %s909, 4
          %s913 = int_to_ptr.hbm [resolvable:$true] %s912
          %918 = dma.vmem_to_hbm [thread:$0]  %s911, 768, %s913, [#allocation6], 256, 256, 16
        $region68: #{tpu_custom_call.1} parent=39 // pred_fallthru
          _
        // Predicated region
        $region69: #{tpu_custom_call.1} parent=39 // pred_check
          %p919 = pneg %p187
        $region70: #{tpu_custom_call.1} parent=39 // pred_check_branch
          %921 = sbr.rel (%p919) target = $region72
        $region71: #{tpu_custom_call.1} parent=39 // pred_region
          %923 = dma.done [#allocation6], 768
        $region72: #{tpu_custom_call.1} parent=39 // pred_fallthru
          _
      $region40: #{tpu_custom_call.1} parent=5 // pred_fallthru
        _
      %p924 = scmp.le.s32.totalorder 2, %s16
      // Predicated region
      $region73: #{tpu_custom_call.1} parent=5 // pred_check
        %p925 = pneg %p924
      $region74: #{tpu_custom_call.1} parent=5 // pred_check_branch
        %927 = sbr.rel (%p925) target = $region76
      $region75: #{tpu_custom_call.1} parent=5 // pred_region
        %s928 = ssub.s32 %s16, 2
      $region76: #{tpu_custom_call.1} parent=5 // pred_fallthru
        _
    $region6: #{tpu_custom_call.1} parent=1 // loop_footer
      %s20 = sadd.s32 1, %s16
    $region7: #{tpu_custom_call.1} parent=1 // loop_footer_branch
      %15 = sbr.rel target = $region3
    $region8: #{tpu_custom_call.1} parent=1 // loop_exit
      _
    %929 = vsyncpa [#allocation5], 1
    %s930 = scalar_lea.sflag [#allocation5], 1
    %931 = vsyncpa %s930, 1
    %932 = vsyncpa [#allocation8], 1
    %s933 = scalar_lea.sflag [#allocation8], 1
    %934 = vsyncpa %s933, 1
    %935 = vsyncpa [#allocation6], 1
    %s936 = scalar_lea.sflag [#allocation6], 1
    %937 = vsyncpa %s936, 1

</llo_original>
